<compile_context>
chip_gen: v6e
topology: v6e:2x2x1
jax: 0.10.0
libtpu: 0.0.40
codegen_flags: <defaults>
</compile_context>

<pallas_src>
import functools

import jax
import jax.numpy as jnp
from jax.experimental import pallas as pl
from jax.experimental.pallas import tpu as pltpu


def _round_up(n, m):
    return (n + m - 1) // m * m


def _num_tensorcores():
    """2 on dual-TensorCore chips (v7x), else 1 (v5e/v6e)."""
    try:
        kind = jax.devices()[0].device_kind.lower().replace(" ", "")
        return 2 if ("v7" in kind or "tpu7" in kind) else 1
    except Exception:
        return 1


def _dqn_mlp_kernel(x_ref, w1_ref, b1_ref, w2_ref, b2_ref, w3_ref, b3_ref, o_ref):
    """Fused 3-layer MLP: relu(relu(x@W1+b1)@W2+b2)@W3+b3 on one batch tile."""
    # x arrives f32; cast to the weight compute dtype (bf16 or f32) for the MXU.
    x = x_ref[...].astype(w1_ref.dtype)

    h1 = jnp.dot(x, w1_ref[...], preferred_element_type=jnp.float32) + b1_ref[...]
    h1 = jnp.maximum(h1, 0.0)

    h2 = jnp.dot(h1.astype(w2_ref.dtype), w2_ref[...],
                 preferred_element_type=jnp.float32) + b2_ref[...]
    h2 = jnp.maximum(h2, 0.0)

    out = jnp.dot(h2.astype(w3_ref.dtype), w3_ref[...],
                  preferred_element_type=jnp.float32) + b3_ref[...]
    o_ref[...] = out.astype(o_ref.dtype)


def prepare_params(params, compute_dtype=jnp.bfloat16):
    """One-time param prep: cast weights to compute dtype, keep biases f32,
    pad output-layer columns to a multiple of 128 (lane-dense stores).

    `params` weights are (in_features, out_features); biases are (1, out_features).
    Returns (prepared_dict, action_size).
    """
    cdt = jnp.dtype(compute_dtype)
    w3 = params["w3"]
    A = w3.shape[1]
    A_pad = _round_up(A, 128)
    prep = {
        "w1": params["w1"].astype(cdt),
        "b1": params["b1"].astype(jnp.float32),
        "w2": params["w2"].astype(cdt),
        "b2": params["b2"].astype(jnp.float32),
        "w3": jnp.pad(w3, ((0, 0), (0, A_pad - A))).astype(cdt),   # zero cols: sliced off
        "b3": jnp.pad(params["b3"], ((0, 0), (0, A_pad - A))).astype(jnp.float32),
    }
    return prep, A


@functools.partial(jax.jit, static_argnames=("block_b", "action_size"))
def _dqn_forward_jit(x, prep, *, block_b, action_size):
    w1, b1 = prep["w1"], prep["b1"]
    w2, b2 = prep["w2"], prep["b2"]
    w3, b3 = prep["w3"], prep["b3"]

    B, S = x.shape
    H1 = w1.shape[1]
    H2 = w2.shape[1]
    A_pad = w3.shape[1]

    B_pad = _round_up(B, block_b)
    x_p = x if B_pad == B else jnp.pad(x, ((0, B_pad - B), (0, 0)))
    grid = (B_pad // block_b,)

    wbytes = jnp.dtype(w1.dtype).itemsize
    cost = pl.CostEstimate(
        flops=2 * B_pad * (S * H1 + H1 * H2 + H2 * A_pad),
        transcendentals=0,
        bytes_accessed=(B_pad * S * x.dtype.itemsize
                        + (S * H1 + H1 * H2 + H2 * A_pad) * wbytes
                        + (H1 + H2 + A_pad) * 4
                        + B_pad * A_pad * 4),
    )

    resident = lambda i: (0, 0)   # weights/biases stay in VMEM across all grid steps
    out = pl.pallas_call(
        _dqn_mlp_kernel,
        out_shape=jax.ShapeDtypeStruct((B_pad, A_pad), jnp.float32),
        grid_spec=pltpu.PrefetchScalarGridSpec(
            num_scalar_prefetch=0,
            grid=grid,
            in_specs=[
                pl.BlockSpec((block_b, S), lambda i: (i, 0)),                       # x
                pl.BlockSpec((S, H1), resident, pipeline_mode=pl.Buffered(1)),      # w1
                pl.BlockSpec((1, H1), resident, pipeline_mode=pl.Buffered(1)),      # b1
                pl.BlockSpec((H1, H2), resident, pipeline_mode=pl.Buffered(1)),     # w2
                pl.BlockSpec((1, H2), resident, pipeline_mode=pl.Buffered(1)),      # b2
                pl.BlockSpec((H2, A_pad), resident, pipeline_mode=pl.Buffered(1)),  # w3
                pl.BlockSpec((1, A_pad), resident, pipeline_mode=pl.Buffered(1)),   # b3
            ],
            out_specs=pl.BlockSpec((block_b, A_pad), lambda i: (i, 0)),
        ),
        compiler_params=pltpu.CompilerParams(
            dimension_semantics=("parallel",),
        ),
        cost_estimate=cost,
    )(x_p, w1, b1, w2, b2, w3, b3)

    return out[:B, :action_size]


def dqn_forward(x, prep, action_size, *, block_b=None):
    """DQN MLP forward with a fused Pallas kernel.

    x:    (B, state_size) float32
    prep: output of prepare_params (weights already cast/padded once).
    block_b: batch rows per grid step. Default: whole batch on v5e/v6e (1 grid step),
             half the batch on dual-TC v7x (2 parallel steps).
    """
    B = x.shape[0]
    if block_b is None:
        steps = _num_tensorcores()
        if B < 8 * steps:
            steps = 1
        block_b = _round_up(B, 8 * steps) // steps
    return _dqn_forward_jit(x, prep, block_b=block_b, action_size=action_size)


def init_params(key, state_size, action_size, hidden_layers=(512, 512)):
    """PyTorch-style uniform(-1/sqrt(fan_in), 1/sqrt(fan_in)) init.
    Weights stored as (in_features, out_features); biases as (1, out_features)."""
    dims = [state_size] + list(hidden_layers) + [action_size]
    params = {}
    keys = jax.random.split(key, 2 * (len(dims) - 1))
    for li in range(len(dims) - 1):
        fan_in, fan_out = dims[li], dims[li + 1]
        bound = 1.0 / jnp.sqrt(jnp.asarray(fan_in, jnp.float32))
        wk, bk = keys[2 * li], keys[2 * li + 1]
        params[f"w{li + 1}"] = jax.random.uniform(
            wk, (fan_in, fan_out), jnp.float32, -bound, bound
        )
        params[f"b{li + 1}"] = jax.random.uniform(
            bk, (1, fan_out), jnp.float32, -bound, bound
        )
    return params


def reference_forward(x, params):
    """Pure-JAX reference of the same MLP for correctness checks."""
    h = jnp.maximum(x @ params["w1"] + params["b1"], 0.0)
    h = jnp.maximum(h @ params["w2"] + params["b2"], 0.0)
    return h @ params["w3"] + params["b3"]


if __name__ == "__main__":
    # Shapes consistent with DQNModel(state_size, action_size) defaults
    # (hidden_layers=(512, 512)); batch like a small replay-buffer batch.
    batch = 256
    state_size = 32
    action_size = 8
    hidden_layers = (512, 512)

    key = jax.random.PRNGKey(0)
    pkey, xkey = jax.random.split(key)
    params = init_params(pkey, state_size, action_size, hidden_layers)
    x = jax.random.normal(xkey, (batch, state_size), jnp.float32)

    ref = reference_forward(x, params)

    # bf16 matmul inputs (default), f32 accumulation + f32 bias/relu.
    prep_bf16, A = prepare_params(params, compute_dtype=jnp.bfloat16)
    out_bf16 = jax.block_until_ready(dqn_forward(x, prep_bf16, A))
    assert out_bf16.shape == (batch, action_size)
    assert jnp.allclose(out_bf16, ref, atol=5e-2, rtol=5e-2), "bf16 mismatch vs reference"

    # Full-precision path (tight tolerance vs reference).
    prep_f32, _ = prepare_params(params, compute_dtype=jnp.float32)
    out_f32 = jax.block_until_ready(dqn_forward(x, prep_f32, A))
    assert out_f32.shape == (batch, action_size)
    assert jnp.allclose(out_f32, ref, atol=1e-4, rtol=1e-4), "f32 mismatch vs reference"

    # Ragged batch (exercises the batch-padding path).
    x_small = x[:13]
    out_small = jax.block_until_ready(dqn_forward(x_small, prep_bf16, A))
    assert out_small.shape == (13, action_size)
    assert jnp.allclose(out_small, ref[:13], atol=5e-2, rtol=5e-2), "ragged-batch mismatch"

    print("KERNEL_OK")
</pallas_src>

<mosaic_0001>
module attributes {stable_mosaic.version = 11 : i64} {
  func.func @_dqn_mlp_kernel(%arg0: i32, %arg1: memref<256x32xf32, #tpu.memory_space<vmem>>, %arg2: memref<32x512xbf16, #tpu.memory_space<vmem>>, %arg3: memref<1x512xf32, #tpu.memory_space<vmem>>, %arg4: memref<512x512xbf16, #tpu.memory_space<vmem>>, %arg5: memref<1x512xf32, #tpu.memory_space<vmem>>, %arg6: memref<512x128xbf16, #tpu.memory_space<vmem>>, %arg7: memref<1x128xf32, #tpu.memory_space<vmem>>, %arg8: memref<256x128xf32, #tpu.memory_space<vmem>>) attributes {dimension_semantics = [#tpu.dimension_semantics<parallel>], iteration_bounds = array<i64: 1>, scalar_prefetch = 0 : i64, scratch_operands = 0 : i64, tpu.core_type = #tpu.core_type<tc>, window_params = [{transform_indices = @transform_0, window_bounds = array<i64: 256, 32>}, {pipeline_mode = #tpu.pipeline_mode<synchronous>, transform_indices = @transform_1, window_bounds = array<i64: 32, 512>}, {pipeline_mode = #tpu.pipeline_mode<synchronous>, transform_indices = @transform_2, window_bounds = array<i64: 1, 512>}, {pipeline_mode = #tpu.pipeline_mode<synchronous>, transform_indices = @transform_3, window_bounds = array<i64: 512, 512>}, {pipeline_mode = #tpu.pipeline_mode<synchronous>, transform_indices = @transform_4, window_bounds = array<i64: 1, 512>}, {pipeline_mode = #tpu.pipeline_mode<synchronous>, transform_indices = @transform_5, window_bounds = array<i64: 512, 128>}, {pipeline_mode = #tpu.pipeline_mode<synchronous>, transform_indices = @transform_6, window_bounds = array<i64: 1, 128>}, {transform_indices = @transform_7, window_bounds = array<i64: 256, 128>}]} {
    %c0 = arith.constant 0 : index
    %c0_0 = arith.constant 0 : index
    %0 = vector.load %arg1[%c0, %c0_0] : memref<256x32xf32, #tpu.memory_space<vmem>>, vector<256x32xf32>
    %1 = arith.truncf %0 : vector<256x32xf32> to vector<256x32xbf16>
    %c0_1 = arith.constant 0 : index
    %c0_2 = arith.constant 0 : index
    %2 = vector.load %arg2[%c0_1, %c0_2] : memref<32x512xbf16, #tpu.memory_space<vmem>>, vector<32x512xbf16>
    %cst = arith.constant dense<0.000000e+00> : vector<256x512xf32>
    %3 = tpu.matmul %1, %2, %cst {dimension_numbers = #tpu.dot_dimension_numbers<[1], [0], [0], [1], [0, 0, 1, 1], [], []>} : vector<256x32xbf16>, vector<32x512xbf16>, vector<256x512xf32> -> vector<256x512xf32>
    %c0_3 = arith.constant 0 : index
    %c0_4 = arith.constant 0 : index
    %4 = vector.load %arg3[%c0_3, %c0_4] : memref<1x512xf32, #tpu.memory_space<vmem>>, vector<1x512xf32>
    %5 = vector.broadcast %4 : vector<1x512xf32> to vector<256x512xf32>
    %6 = arith.addf %3, %5 : vector<256x512xf32>
    %cst_5 = arith.constant 0.000000e+00 : f32
    %7 = vector.broadcast %cst_5 : f32 to vector<256x512xf32>
    %8 = arith.maximumf %6, %7 : vector<256x512xf32>
    %9 = arith.truncf %8 : vector<256x512xf32> to vector<256x512xbf16>
    %c0_6 = arith.constant 0 : index
    %c0_7 = arith.constant 0 : index
    %10 = vector.load %arg4[%c0_6, %c0_7] : memref<512x512xbf16, #tpu.memory_space<vmem>>, vector<512x512xbf16>
    %cst_8 = arith.constant dense<0.000000e+00> : vector<256x512xf32>
    %11 = tpu.matmul %9, %10, %cst_8 {dimension_numbers = #tpu.dot_dimension_numbers<[1], [0], [0], [1], [0, 0, 1, 1], [], []>} : vector<256x512xbf16>, vector<512x512xbf16>, vector<256x512xf32> -> vector<256x512xf32>
    %c0_9 = arith.constant 0 : index
    %c0_10 = arith.constant 0 : index
    %12 = vector.load %arg5[%c0_9, %c0_10] : memref<1x512xf32, #tpu.memory_space<vmem>>, vector<1x512xf32>
    %13 = vector.broadcast %12 : vector<1x512xf32> to vector<256x512xf32>
    %14 = arith.addf %11, %13 : vector<256x512xf32>
    %cst_11 = arith.constant 0.000000e+00 : f32
    %15 = vector.broadcast %cst_11 : f32 to vector<256x512xf32>
    %16 = arith.maximumf %14, %15 : vector<256x512xf32>
    %17 = arith.truncf %16 : vector<256x512xf32> to vector<256x512xbf16>
    %c0_12 = arith.constant 0 : index
    %c0_13 = arith.constant 0 : index
    %18 = vector.load %arg6[%c0_12, %c0_13] : memref<512x128xbf16, #tpu.memory_space<vmem>>, vector<512x128xbf16>
    %cst_14 = arith.constant dense<0.000000e+00> : vector<256x128xf32>
    %19 = tpu.matmul %17, %18, %cst_14 {dimension_numbers = #tpu.dot_dimension_numbers<[1], [0], [0], [1], [0, 0, 1, 1], [], []>} : vector<256x512xbf16>, vector<512x128xbf16>, vector<256x128xf32> -> vector<256x128xf32>
    %c0_15 = arith.constant 0 : index
    %c0_16 = arith.constant 0 : index
    %20 = vector.load %arg7[%c0_15, %c0_16] : memref<1x128xf32, #tpu.memory_space<vmem>>, vector<1x128xf32>
    %21 = vector.broadcast %20 : vector<1x128xf32> to vector<256x128xf32>
    %22 = arith.addf %19, %21 : vector<256x128xf32>
    %c0_17 = arith.constant 0 : index
    %c0_18 = arith.constant 0 : index
    %23 = vector.load %arg8[%c0_17, %c0_18] : memref<256x128xf32, #tpu.memory_space<vmem>>, vector<256x128xf32>
    tpu.vector_store %arg8[%c0_17, %c0_18], %22 {strides = array<i32>} : memref<256x128xf32, #tpu.memory_space<vmem>>, vector<256x128xf32>,
    return
  }
  func.func @transform_0(%arg0: i32) -> (i32, i32) {
    %c0_i32 = arith.constant 0 : i32
    %c0_i32_0 = arith.constant 0 : i32
    return %arg0, %c0_i32 : i32, i32
  }
  func.func @transform_1(%arg0: i32) -> (i32, i32) {
    %c0_i32 = arith.constant 0 : i32
    %c0_i32_0 = arith.constant 0 : i32
    %c0_i32_1 = arith.constant 0 : i32
    return %c0_i32, %c0_i32_0 : i32, i32
  }
  func.func @transform_2(%arg0: i32) -> (i32, i32) {
    %c0_i32 = arith.constant 0 : i32
    %c0_i32_0 = arith.constant 0 : i32
    %c0_i32_1 = arith.constant 0 : i32
    return %c0_i32, %c0_i32_0 : i32, i32
  }
  func.func @transform_3(%arg0: i32) -> (i32, i32) {
    %c0_i32 = arith.constant 0 : i32
    %c0_i32_0 = arith.constant 0 : i32
    %c0_i32_1 = arith.constant 0 : i32
    return %c0_i32, %c0_i32_0 : i32, i32
  }
  func.func @transform_4(%arg0: i32) -> (i32, i32) {
    %c0_i32 = arith.constant 0 : i32
    %c0_i32_0 = arith.constant 0 : i32
    %c0_i32_1 = arith.constant 0 : i32
    return %c0_i32, %c0_i32_0 : i32, i32
  }
  func.func @transform_5(%arg0: i32) -> (i32, i32) {
    %c0_i32 = arith.constant 0 : i32
    %c0_i32_0 = arith.constant 0 : i32
    %c0_i32_1 = arith.constant 0 : i32
    return %c0_i32, %c0_i32_0 : i32, i32
  }
  func.func @transform_6(%arg0: i32) -> (i32, i32) {
    %c0_i32 = arith.constant 0 : i32
    %c0_i32_0 = arith.constant 0 : i32
    %c0_i32_1 = arith.constant 0 : i32
    return %c0_i32, %c0_i32_0 : i32, i32
  }
  func.func @transform_7(%arg0: i32) -> (i32, i32) {
    %c0_i32 = arith.constant 0 : i32
    %c0_i32_0 = arith.constant 0 : i32
    return %arg0, %c0_i32 : i32, i32
  }
}

</mosaic_0001>

<llo_original>
// kernel: _dqn_forward_jit.1
$region0: #{_dqn_forward_jit.1}
  #allocation0 [shape = 'u32[]', space=smem, size = 0x4, offset = 0x4, fixed_abs, tag = 'smem constant byte address 0x4 - core index']
  #allocation1 [shape = 'u32[144,128]{1,0:T(1,128)}', space=vmem, size = 0x12000, scoped, tag = 'internal scratch']
  %s0 = inlined_call_operand.vmem [shape: f32[256,32], index: 0, kind: input, shape index: {}]
  %s1 = inlined_call_operand.vmem [shape: bf16[32,512], index: 1, kind: input, shape index: {}]
  %s2 = inlined_call_operand.vmem [shape: f32[1,512], index: 2, kind: input, shape index: {}]
  %s3 = inlined_call_operand.hbm [shape: bf16[512,512], index: 3, kind: input, shape index: {}]
  %s4 = inlined_call_operand.vmem [shape: f32[1,512], index: 4, kind: input, shape index: {}]
  %s5 = inlined_call_operand.vmem [shape: bf16[512,128], index: 5, kind: input, shape index: {}]
  %s6 = inlined_call_operand.vmem [shape: f32[1,128], index: 6, kind: input, shape index: {}]
  %s7 = inlined_call_operand.vmem [shape: f32[256,128], index: 7, kind: output, shape index: {}]
  %s8 = sld [smem:[#allocation0]]
  $region42: #{_dqn_forward_jit.1} parent=0
    _
  %s10 = ssub.s32 1, %s8
  %s11 = scalar_select 0, %s10, %s8
  $region1: #{_dqn_forward_jit.1} parent=0
    #allocation2 [shape = 'u8[524288]{0}', space=vmem, size = 0x80000, scoped, tag = 'input window, operand 3, single buffered']
    #allocation3 [shape = 's32[1]{0}', space=sflag, size = 0x4, scoped, tag = 'scoped memory for _dqn_forward_jit.1']
    %12 = vsyncpa [#allocation3], 0
    // Predicated region
    $region2: #{_dqn_forward_jit.1} parent=1 // pred_check
      _
    $region3: #{_dqn_forward_jit.1} parent=1 // pred_check_branch
      %14 = sbr.rel (0) target = $region5
    $region4: #{_dqn_forward_jit.1} parent=1 // pred_region
      _
    $region5: #{_dqn_forward_jit.1} parent=1 // pred_fallthru
      _
    // Predicated region
    $region6: #{_dqn_forward_jit.1} parent=1 // pred_check
      _
    $region7: #{_dqn_forward_jit.1} parent=1 // pred_check_branch
      %16 = sbr.rel (0) target = $region9
    $region8: #{_dqn_forward_jit.1} parent=1 // pred_region
      _
    $region9: #{_dqn_forward_jit.1} parent=1 // pred_fallthru
      _
    // Predicated region
    $region10: #{_dqn_forward_jit.1} parent=1 // pred_check
      _
    $region11: #{_dqn_forward_jit.1} parent=1 // pred_check_branch
      %18 = sbr.rel (0) target = $region13
    $region12: #{_dqn_forward_jit.1} parent=1 // pred_region
      _
    $region13: #{_dqn_forward_jit.1} parent=1 // pred_fallthru
      _
    // Predicated region
    $region14: #{_dqn_forward_jit.1} parent=1 // pred_check
      _
    $region15: #{_dqn_forward_jit.1} parent=1 // pred_check_branch
      %20 = sbr.rel (0) target = $region17
    $region16: #{_dqn_forward_jit.1} parent=1 // pred_region
      %s22 = ssub.s32 16384, 16384
      %23 = vsyncadd [#allocation3], %s22
      %s24 = sshll.u32 [#allocation2], 4
      %s25 = int_to_ptr.vmem [resolvable:$true] %s24
      %30 = dma.hbm_to_vmem [thread:$0]  %s3, 16384, %s25, [#allocation3], 256, 256, 16
    $region17: #{_dqn_forward_jit.1} parent=1 // pred_fallthru
      _
    // Predicated region
    $region18: #{_dqn_forward_jit.1} parent=1 // pred_check
      _
    $region19: #{_dqn_forward_jit.1} parent=1 // pred_check_branch
      %32 = sbr.rel (0) target = $region21
    $region20: #{_dqn_forward_jit.1} parent=1 // pred_region
      _
    $region21: #{_dqn_forward_jit.1} parent=1 // pred_fallthru
      _
    // Predicated region
    $region22: #{_dqn_forward_jit.1} parent=1 // pred_check
      _
    $region23: #{_dqn_forward_jit.1} parent=1 // pred_check_branch
      %34 = sbr.rel (0) target = $region25
    $region24: #{_dqn_forward_jit.1} parent=1 // pred_region
      _
    $region25: #{_dqn_forward_jit.1} parent=1 // pred_fallthru
      _
    // Predicated region
    $region26: #{_dqn_forward_jit.1} parent=1 // pred_check
      _
    $region27: #{_dqn_forward_jit.1} parent=1 // pred_check_branch
      %36 = sbr.rel (0) target = $region29
    $region28: #{_dqn_forward_jit.1} parent=1 // pred_region
      _
    $region29: #{_dqn_forward_jit.1} parent=1 // pred_fallthru
      _
    // Predicated region
    $region30: #{_dqn_forward_jit.1} parent=1 // pred_check
      _
    $region31: #{_dqn_forward_jit.1} parent=1 // pred_check_branch
      %38 = sbr.rel (0) target = $region33
    $region32: #{_dqn_forward_jit.1} parent=1 // pred_region
      %39 = dma.done [#allocation3], 16384
    $region33: #{_dqn_forward_jit.1} parent=1 // pred_fallthru
      _
    %v41 = vld [vmem:[%s0] sm:$0xff]
    %v42 = vld [vmem:[%s0 + $0x8] sm:$0xff]
    %v43 = vld [vmem:[%s0 + $0x10] sm:$0xff]
    %v44 = vld [vmem:[%s0 + $0x18] sm:$0xff]
    %v45 = vld [vmem:[%s0 + $0x20] sm:$0xff]
    %v46 = vld [vmem:[%s0 + $0x28] sm:$0xff]
    %v47 = vld [vmem:[%s0 + $0x30] sm:$0xff]
    %v48 = vld [vmem:[%s0 + $0x38] sm:$0xff]
    %v49 = vld [vmem:[%s0 + $0x40] sm:$0xff]
    %v50 = vld [vmem:[%s0 + $0x48] sm:$0xff]
    %v51 = vld [vmem:[%s0 + $0x50] sm:$0xff]
    %v52 = vld [vmem:[%s0 + $0x58] sm:$0xff]
    %v53 = vld [vmem:[%s0 + $0x60] sm:$0xff]
    %v54 = vld [vmem:[%s0 + $0x68] sm:$0xff]
    %v55 = vld [vmem:[%s0 + $0x70] sm:$0xff]
    %v56 = vld [vmem:[%s0 + $0x78] sm:$0xff]
    %v57 = vld [vmem:[%s0 + $0x80] sm:$0xff]
    %v58 = vld [vmem:[%s0 + $0x88] sm:$0xff]
    %v59 = vld [vmem:[%s0 + $0x90] sm:$0xff]
    %v60 = vld [vmem:[%s0 + $0x98] sm:$0xff]
    %v61 = vld [vmem:[%s0 + $0xa0] sm:$0xff]
    %v62 = vld [vmem:[%s0 + $0xa8] sm:$0xff]
    %v63 = vld [vmem:[%s0 + $0xb0] sm:$0xff]
    %v64 = vld [vmem:[%s0 + $0xb8] sm:$0xff]
    %v65 = vld [vmem:[%s0 + $0xc0] sm:$0xff]
    %v66 = vld [vmem:[%s0 + $0xc8] sm:$0xff]
    %v67 = vld [vmem:[%s0 + $0xd0] sm:$0xff]
    %v68 = vld [vmem:[%s0 + $0xd8] sm:$0xff]
    %v69 = vld [vmem:[%s0 + $0xe0] sm:$0xff]
    %v70 = vld [vmem:[%s0 + $0xe8] sm:$0xff]
    %v71 = vld [vmem:[%s0 + $0xf0] sm:$0xff]
    %v72 = vld [vmem:[%s0 + $0xf8] sm:$0xff]
    %v73 = vpack.c.bf16 %v42, %v41
    %v74 = vpack.c.bf16 %v44, %v43
    %v75 = vpack.c.bf16 %v46, %v45
    %v76 = vpack.c.bf16 %v48, %v47
    %v77 = vpack.c.bf16 %v50, %v49
    %v78 = vpack.c.bf16 %v52, %v51
    %v79 = vpack.c.bf16 %v54, %v53
    %v80 = vpack.c.bf16 %v56, %v55
    %v81 = vpack.c.bf16 %v58, %v57
    %v82 = vpack.c.bf16 %v60, %v59
    %v83 = vpack.c.bf16 %v62, %v61
    %v84 = vpack.c.bf16 %v64, %v63
    %v85 = vpack.c.bf16 %v66, %v65
    %v86 = vpack.c.bf16 %v68, %v67
    %v87 = vpack.c.bf16 %v70, %v69
    %v88 = vpack.c.bf16 %v72, %v71
    %v89 = vld [vmem:[%s1] sm:$0xff]
    %v90 = vld [vmem:[%s1 + $0x8] sm:$0xff]
    %v91 = vld [vmem:[%s1 + $0x10] sm:$0xff]
    %v92 = vld [vmem:[%s1 + $0x18] sm:$0xff]
    %v93 = vld [vmem:[%s1 + $0x20] sm:$0xff]
    %v94 = vld [vmem:[%s1 + $0x28] sm:$0xff]
    %v95 = vld [vmem:[%s1 + $0x30] sm:$0xff]
    %v96 = vld [vmem:[%s1 + $0x38] sm:$0xff]
    %v97 = vld [vmem:[%s2] sm:$0xf]
    %v99 = vlaneseq
    %v100 = vshrl.u32 %v99, 7
    %v101 = vsub.s32 0, %v100
    %v102 = vrot.slane %v97, %v101
    %v103 = vlaneseq
    %v104 = vshrl.u32 %v103, 7
    %v105 = vsub.s32 1, %v104
    %v106 = vrot.slane %v97, %v105
    %v107 = vlaneseq
    %v108 = vshrl.u32 %v107, 7
    %v109 = vsub.s32 2, %v108
    %v110 = vrot.slane %v97, %v109
    %v111 = vlaneseq
    %v112 = vshrl.u32 %v111, 7
    %v113 = vsub.s32 3, %v112
    %v114 = vrot.slane %v97, %v113
    %v127 = vunpack.c.l.b16 %v89
    %v128 = vunpack.c.h.b16 %v89
    %v129 = vunpack.c.l.b16 %v90
    %v130 = vunpack.c.h.b16 %v90
    %v131 = vunpack.c.l.b16 %v91
    %v132 = vunpack.c.h.b16 %v91
    %v133 = vunpack.c.l.b16 %v92
    %v134 = vunpack.c.h.b16 %v92
    %v135 = vunpack.c.l.b16 %v93
    %v136 = vunpack.c.h.b16 %v93
    %v137 = vunpack.c.l.b16 %v94
    %v138 = vunpack.c.h.b16 %v94
    %v139 = vunpack.c.l.b16 %v95
    %v140 = vunpack.c.h.b16 %v95
    %v141 = vunpack.c.l.b16 %v96
    %v142 = vunpack.c.h.b16 %v96
    %v143 = vpack.c.b16 %v131, %v127
    %v144 = vpack.c.b16 %v132, %v128
    %v145 = vpack.c.b16 %v133, %v129
    %v146 = vpack.c.b16 %v134, %v130
    %v147 = vpack.c.b16 %v139, %v135
    %v148 = vpack.c.b16 %v140, %v136
    %v149 = vpack.c.b16 %v141, %v137
    %v150 = vpack.c.b16 %v142, %v138
    %vm159 = vcmask 261120
    %v161 = vsel %vm159, %v73, 0
    %v164 = vsel %vm159, %v74, 0
    %v167 = vsel %vm159, %v75, 0
    %v170 = vsel %vm159, %v76, 0
    %v173 = vsel %vm159, %v77, 0
    %v176 = vsel %vm159, %v78, 0
    %v179 = vsel %vm159, %v79, 0
    %v182 = vsel %vm159, %v80, 0
    %v185 = vsel %vm159, %v81, 0
    %v188 = vsel %vm159, %v82, 0
    %v191 = vsel %vm159, %v83, 0
    %v194 = vsel %vm159, %v84, 0
    %v197 = vsel %vm159, %v85, 0
    %v200 = vsel %vm159, %v86, 0
    %v203 = vsel %vm159, %v87, 0
    %v206 = vsel %vm159, %v88, 0
    %208 = vmatprep.subr.bf16.mxu0 0
    %209 = vmatpush1.bf16.msra.mxu0 0
    %210 = vmatprep.subr.bf16.mxu0 0
    %211 = vmatpush1.bf16.msra.mxu0 0
    %212 = vmatprep.subr.bf16.mxu0 0
    %213 = vmatpush1.bf16.msra.mxu0 0
    %214 = vmatprep.subr.bf16.mxu0 0
    %215 = vmatpush1.bf16.msra.mxu0 0
    %216 = vmatprep.subr.bf16.mxu0 0
    %217 = vmatpush1.bf16.msra.mxu0 0
    %218 = vmatprep.subr.bf16.mxu0 0
    %219 = vmatpush1.bf16.msra.mxu0 0
    %220 = vmatprep.subr.bf16.mxu0 %v148
    %221 = vmatpush1.bf16.msra.mxu0 %v147
    %222 = vmatprep.subr.bf16.mxu0 %v144
    %223 = vmatpush1.bf16.msra.mxu0 %v143
    %224 = vmatprep.subr.bf16.mxu0 0
    %225 = vmatpush2.bf16.msra.mxu0 0
    %226 = vmatprep.subr.bf16.mxu0 0
    %227 = vmatpush2.bf16.msra.mxu0 0
    %228 = vmatprep.subr.bf16.mxu0 0
    %229 = vmatpush2.bf16.msra.mxu0 0
    %230 = vmatprep.subr.bf16.mxu0 0
    %231 = vmatpush2.bf16.msra.mxu0 0
    %232 = vmatprep.subr.bf16.mxu0 0
    %233 = vmatpush2.bf16.msra.mxu0 0
    %234 = vmatprep.subr.bf16.mxu0 0
    %235 = vmatpush2.bf16.msra.mxu0 0
    %236 = vmatprep.subr.bf16.mxu0 0
    %237 = vmatpush2.bf16.msra.mxu0 0
    %238 = vmatprep.subr.bf16.mxu0 0
    %239 = vmatpush2.bf16.msra.mxu0 0
    %240 = vmatprep.mubr.bf16.mxu0 0
    %241 = vmatmul.mubr.bf16.gmra.mxu0 %v161
    %v242 = vpop.f32.mrf.mxu0
    %v243 = vadd.f32 %v102, %v242
    %v244 = vpop.f32.mrf.mxu0
    %v245 = vadd.f32 %v106, %v244
    %v246 = vpop.f32.mrf.mxu0
    %v247 = vadd.f32 %v102, %v246
    %v248 = vpop.f32.mrf.mxu0
    %v249 = vadd.f32 %v106, %v248
    %250 = vmatprep.mubr.bf16.mxu0 0
    %251 = vmatmul.mubr.bf16.gmra.mxu0 %v164
    %v252 = vpop.f32.mrf.mxu0
    %v253 = vadd.f32 %v102, %v252
    %v254 = vpop.f32.mrf.mxu0
    %v255 = vadd.f32 %v106, %v254
    %v256 = vpop.f32.mrf.mxu0
    %v257 = vadd.f32 %v102, %v256
    %v258 = vpop.f32.mrf.mxu0
    %v259 = vadd.f32 %v106, %v258
    %260 = vmatprep.mubr.bf16.mxu0 0
    %261 = vmatmul.mubr.bf16.gmra.mxu0 %v167
    %v262 = vpop.f32.mrf.mxu0
    %v263 = vadd.f32 %v102, %v262
    %v264 = vpop.f32.mrf.mxu0
    %v265 = vadd.f32 %v106, %v264
    %v266 = vpop.f32.mrf.mxu0
    %v267 = vadd.f32 %v102, %v266
    %v268 = vpop.f32.mrf.mxu0
    %v269 = vadd.f32 %v106, %v268
    %270 = vmatprep.mubr.bf16.mxu0 0
    %271 = vmatmul.mubr.bf16.gmra.mxu0 %v170
    %v272 = vpop.f32.mrf.mxu0
    %v273 = vadd.f32 %v102, %v272
    %v274 = vpop.f32.mrf.mxu0
    %v275 = vadd.f32 %v106, %v274
    %v276 = vpop.f32.mrf.mxu0
    %v277 = vadd.f32 %v102, %v276
    %v278 = vpop.f32.mrf.mxu0
    %v279 = vadd.f32 %v106, %v278
    %280 = vmatprep.mubr.bf16.mxu0 0
    %281 = vmatmul.mubr.bf16.gmra.mxu0 %v173
    %v282 = vpop.f32.mrf.mxu0
    %v283 = vadd.f32 %v102, %v282
    %v284 = vpop.f32.mrf.mxu0
    %v285 = vadd.f32 %v106, %v284
    %v286 = vpop.f32.mrf.mxu0
    %v287 = vadd.f32 %v102, %v286
    %v288 = vpop.f32.mrf.mxu0
    %v289 = vadd.f32 %v106, %v288
    %290 = vmatprep.mubr.bf16.mxu0 0
    %291 = vmatmul.mubr.bf16.gmra.mxu0 %v176
    %v292 = vpop.f32.mrf.mxu0
    %v293 = vadd.f32 %v102, %v292
    %v294 = vpop.f32.mrf.mxu0
    %v295 = vadd.f32 %v106, %v294
    %v296 = vpop.f32.mrf.mxu0
    %v297 = vadd.f32 %v102, %v296
    %v298 = vpop.f32.mrf.mxu0
    %v299 = vadd.f32 %v106, %v298
    %300 = vmatprep.mubr.bf16.mxu0 0
    %301 = vmatmul.mubr.bf16.gmra.mxu0 %v179
    %v302 = vpop.f32.mrf.mxu0
    %v303 = vadd.f32 %v102, %v302
    %v304 = vpop.f32.mrf.mxu0
    %v305 = vadd.f32 %v106, %v304
    %v306 = vpop.f32.mrf.mxu0
    %v307 = vadd.f32 %v102, %v306
    %v308 = vpop.f32.mrf.mxu0
    %v309 = vadd.f32 %v106, %v308
    %310 = vmatprep.mubr.bf16.mxu0 0
    %311 = vmatmul.mubr.bf16.gmra.mxu0 %v182
    %v312 = vpop.f32.mrf.mxu0
    %v313 = vadd.f32 %v102, %v312
    %v314 = vpop.f32.mrf.mxu0
    %v315 = vadd.f32 %v106, %v314
    %v316 = vpop.f32.mrf.mxu0
    %v317 = vadd.f32 %v102, %v316
    %v318 = vpop.f32.mrf.mxu0
    %v319 = vadd.f32 %v106, %v318
    %320 = vmatprep.mubr.bf16.mxu0 0
    %321 = vmatmul.mubr.bf16.gmra.mxu0 %v185
    %v322 = vpop.f32.mrf.mxu0
    %v323 = vadd.f32 %v102, %v322
    %v324 = vpop.f32.mrf.mxu0
    %v325 = vadd.f32 %v106, %v324
    %v326 = vpop.f32.mrf.mxu0
    %v327 = vadd.f32 %v102, %v326
    %v328 = vpop.f32.mrf.mxu0
    %v329 = vadd.f32 %v106, %v328
    %330 = vmatprep.mubr.bf16.mxu0 0
    %331 = vmatmul.mubr.bf16.gmra.mxu0 %v188
    %v332 = vpop.f32.mrf.mxu0
    %v333 = vadd.f32 %v102, %v332
    %v334 = vpop.f32.mrf.mxu0
    %v335 = vadd.f32 %v106, %v334
    %v336 = vpop.f32.mrf.mxu0
    %v337 = vadd.f32 %v102, %v336
    %v338 = vpop.f32.mrf.mxu0
    %v339 = vadd.f32 %v106, %v338
    %340 = vmatprep.mubr.bf16.mxu0 0
    %341 = vmatmul.mubr.bf16.gmra.mxu0 %v191
    %v342 = vpop.f32.mrf.mxu0
    %v343 = vadd.f32 %v102, %v342
    %v344 = vpop.f32.mrf.mxu0
    %v345 = vadd.f32 %v106, %v344
    %v346 = vpop.f32.mrf.mxu0
    %v347 = vadd.f32 %v102, %v346
    %v348 = vpop.f32.mrf.mxu0
    %v349 = vadd.f32 %v106, %v348
    %350 = vmatprep.mubr.bf16.mxu0 0
    %351 = vmatmul.mubr.bf16.gmra.mxu0 %v194
    %v352 = vpop.f32.mrf.mxu0
    %v353 = vadd.f32 %v102, %v352
    %v354 = vpop.f32.mrf.mxu0
    %v355 = vadd.f32 %v106, %v354
    %v356 = vpop.f32.mrf.mxu0
    %v357 = vadd.f32 %v102, %v356
    %v358 = vpop.f32.mrf.mxu0
    %v359 = vadd.f32 %v106, %v358
    %360 = vmatprep.mubr.bf16.mxu0 0
    %361 = vmatmul.mubr.bf16.gmra.mxu0 %v197
    %v362 = vpop.f32.mrf.mxu0
    %v363 = vadd.f32 %v102, %v362
    %v364 = vpop.f32.mrf.mxu0
    %v365 = vadd.f32 %v106, %v364
    %v366 = vpop.f32.mrf.mxu0
    %v367 = vadd.f32 %v102, %v366
    %v368 = vpop.f32.mrf.mxu0
    %v369 = vadd.f32 %v106, %v368
    %370 = vmatprep.mubr.bf16.mxu0 0
    %371 = vmatmul.mubr.bf16.gmra.mxu0 %v200
    %v372 = vpop.f32.mrf.mxu0
    %v373 = vadd.f32 %v102, %v372
    %v374 = vpop.f32.mrf.mxu0
    %v375 = vadd.f32 %v106, %v374
    %v376 = vpop.f32.mrf.mxu0
    %v377 = vadd.f32 %v102, %v376
    %v378 = vpop.f32.mrf.mxu0
    %v379 = vadd.f32 %v106, %v378
    %380 = vmatprep.mubr.bf16.mxu0 0
    %381 = vmatmul.mubr.bf16.gmra.mxu0 %v203
    %v382 = vpop.f32.mrf.mxu0
    %v383 = vadd.f32 %v102, %v382
    %v384 = vpop.f32.mrf.mxu0
    %v385 = vadd.f32 %v106, %v384
    %v386 = vpop.f32.mrf.mxu0
    %v387 = vadd.f32 %v102, %v386
    %v388 = vpop.f32.mrf.mxu0
    %v389 = vadd.f32 %v106, %v388
    %390 = vmatprep.mubr.bf16.mxu0 0
    %391 = vmatmul.mubr.bf16.gmra.mxu0 %v206
    %v392 = vpop.f32.mrf.mxu0
    %v393 = vadd.f32 %v102, %v392
    %v394 = vpop.f32.mrf.mxu0
    %v395 = vadd.f32 %v106, %v394
    %v396 = vpop.f32.mrf.mxu0
    %v397 = vadd.f32 %v102, %v396
    %v398 = vpop.f32.mrf.mxu0
    %v399 = vadd.f32 %v106, %v398
    %400 = vdwg.mxu0
    %401 = vmatprep.subr.bf16.mxu0 0
    %402 = vmatpush1.bf16.msra.mxu0 0
    %403 = vmatprep.subr.bf16.mxu0 0
    %404 = vmatpush1.bf16.msra.mxu0 0
    %405 = vmatprep.subr.bf16.mxu0 0
    %406 = vmatpush1.bf16.msra.mxu0 0
    %407 = vmatprep.subr.bf16.mxu0 0
    %408 = vmatpush1.bf16.msra.mxu0 0
    %409 = vmatprep.subr.bf16.mxu0 0
    %410 = vmatpush1.bf16.msra.mxu0 0
    %411 = vmatprep.subr.bf16.mxu0 0
    %412 = vmatpush1.bf16.msra.mxu0 0
    %413 = vmatprep.subr.bf16.mxu0 %v150
    %414 = vmatpush1.bf16.msra.mxu0 %v149
    %415 = vmatprep.subr.bf16.mxu0 %v146
    %416 = vmatpush1.bf16.msra.mxu0 %v145
    %417 = vmatprep.subr.bf16.mxu0 0
    %418 = vmatpush2.bf16.msra.mxu0 0
    %419 = vmatprep.subr.bf16.mxu0 0
    %420 = vmatpush2.bf16.msra.mxu0 0
    %421 = vmatprep.subr.bf16.mxu0 0
    %422 = vmatpush2.bf16.msra.mxu0 0
    %423 = vmatprep.subr.bf16.mxu0 0
    %424 = vmatpush2.bf16.msra.mxu0 0
    %425 = vmatprep.subr.bf16.mxu0 0
    %426 = vmatpush2.bf16.msra.mxu0 0
    %427 = vmatprep.subr.bf16.mxu0 0
    %428 = vmatpush2.bf16.msra.mxu0 0
    %429 = vmatprep.subr.bf16.mxu0 0
    %430 = vmatpush2.bf16.msra.mxu0 0
    %431 = vmatprep.subr.bf16.mxu0 0
    %432 = vmatpush2.bf16.msra.mxu0 0
    %433 = vmatprep.mubr.bf16.mxu0 0
    %434 = vmatmul.mubr.bf16.gmra.mxu0 %v161
    %v435 = vpop.f32.mrf.mxu0
    %v436 = vadd.f32 %v110, %v435
    %v437 = vpop.f32.mrf.mxu0
    %v438 = vadd.f32 %v114, %v437
    %v439 = vpop.f32.mrf.mxu0
    %v440 = vadd.f32 %v110, %v439
    %v441 = vpop.f32.mrf.mxu0
    %v442 = vadd.f32 %v114, %v441
    %443 = vmatprep.mubr.bf16.mxu0 0
    %444 = vmatmul.mubr.bf16.gmra.mxu0 %v164
    %v445 = vpop.f32.mrf.mxu0
    %v446 = vadd.f32 %v110, %v445
    %v447 = vpop.f32.mrf.mxu0
    %v448 = vadd.f32 %v114, %v447
    %v449 = vpop.f32.mrf.mxu0
    %v450 = vadd.f32 %v110, %v449
    %v451 = vpop.f32.mrf.mxu0
    %v452 = vadd.f32 %v114, %v451
    %453 = vmatprep.mubr.bf16.mxu0 0
    %454 = vmatmul.mubr.bf16.gmra.mxu0 %v167
    %v455 = vpop.f32.mrf.mxu0
    %v456 = vadd.f32 %v110, %v455
    %v457 = vpop.f32.mrf.mxu0
    %v458 = vadd.f32 %v114, %v457
    %v459 = vpop.f32.mrf.mxu0
    %v460 = vadd.f32 %v110, %v459
    %v461 = vpop.f32.mrf.mxu0
    %v462 = vadd.f32 %v114, %v461
    %463 = vmatprep.mubr.bf16.mxu0 0
    %464 = vmatmul.mubr.bf16.gmra.mxu0 %v170
    %v465 = vpop.f32.mrf.mxu0
    %v466 = vadd.f32 %v110, %v465
    %v467 = vpop.f32.mrf.mxu0
    %v468 = vadd.f32 %v114, %v467
    %v469 = vpop.f32.mrf.mxu0
    %v470 = vadd.f32 %v110, %v469
    %v471 = vpop.f32.mrf.mxu0
    %v472 = vadd.f32 %v114, %v471
    %473 = vmatprep.mubr.bf16.mxu0 0
    %474 = vmatmul.mubr.bf16.gmra.mxu0 %v173
    %v475 = vpop.f32.mrf.mxu0
    %v476 = vadd.f32 %v110, %v475
    %v477 = vpop.f32.mrf.mxu0
    %v478 = vadd.f32 %v114, %v477
    %v479 = vpop.f32.mrf.mxu0
    %v480 = vadd.f32 %v110, %v479
    %v481 = vpop.f32.mrf.mxu0
    %v482 = vadd.f32 %v114, %v481
    %483 = vmatprep.mubr.bf16.mxu0 0
    %484 = vmatmul.mubr.bf16.gmra.mxu0 %v176
    %v485 = vpop.f32.mrf.mxu0
    %v486 = vadd.f32 %v110, %v485
    %v487 = vpop.f32.mrf.mxu0
    %v488 = vadd.f32 %v114, %v487
    %v489 = vpop.f32.mrf.mxu0
    %v490 = vadd.f32 %v110, %v489
    %v491 = vpop.f32.mrf.mxu0
    %v492 = vadd.f32 %v114, %v491
    %493 = vmatprep.mubr.bf16.mxu0 0
    %494 = vmatmul.mubr.bf16.gmra.mxu0 %v179
    %v495 = vpop.f32.mrf.mxu0
    %v496 = vadd.f32 %v110, %v495
    %v497 = vpop.f32.mrf.mxu0
    %v498 = vadd.f32 %v114, %v497
    %v499 = vpop.f32.mrf.mxu0
    %v500 = vadd.f32 %v110, %v499
    %v501 = vpop.f32.mrf.mxu0
    %v502 = vadd.f32 %v114, %v501
    %503 = vmatprep.mubr.bf16.mxu0 0
    %504 = vmatmul.mubr.bf16.gmra.mxu0 %v182
    %v505 = vpop.f32.mrf.mxu0
    %v506 = vadd.f32 %v110, %v505
    %v507 = vpop.f32.mrf.mxu0
    %v508 = vadd.f32 %v114, %v507
    %v509 = vpop.f32.mrf.mxu0
    %v510 = vadd.f32 %v110, %v509
    %v511 = vpop.f32.mrf.mxu0
    %v512 = vadd.f32 %v114, %v511
    %513 = vmatprep.mubr.bf16.mxu0 0
    %514 = vmatmul.mubr.bf16.gmra.mxu0 %v185
    %v515 = vpop.f32.mrf.mxu0
    %v516 = vadd.f32 %v110, %v515
    %v517 = vpop.f32.mrf.mxu0
    %v518 = vadd.f32 %v114, %v517
    %v519 = vpop.f32.mrf.mxu0
    %v520 = vadd.f32 %v110, %v519
    %v521 = vpop.f32.mrf.mxu0
    %v522 = vadd.f32 %v114, %v521
    %523 = vmatprep.mubr.bf16.mxu0 0
    %524 = vmatmul.mubr.bf16.gmra.mxu0 %v188
    %v525 = vpop.f32.mrf.mxu0
    %v526 = vadd.f32 %v110, %v525
    %v527 = vpop.f32.mrf.mxu0
    %v528 = vadd.f32 %v114, %v527
    %v529 = vpop.f32.mrf.mxu0
    %v530 = vadd.f32 %v110, %v529
    %v531 = vpop.f32.mrf.mxu0
    %v532 = vadd.f32 %v114, %v531
    %533 = vmatprep.mubr.bf16.mxu0 0
    %534 = vmatmul.mubr.bf16.gmra.mxu0 %v191
    %v535 = vpop.f32.mrf.mxu0
    %v536 = vadd.f32 %v110, %v535
    %v537 = vpop.f32.mrf.mxu0
    %v538 = vadd.f32 %v114, %v537
    %v539 = vpop.f32.mrf.mxu0
    %v540 = vadd.f32 %v110, %v539
    %v541 = vpop.f32.mrf.mxu0
    %v542 = vadd.f32 %v114, %v541
    %543 = vmatprep.mubr.bf16.mxu0 0
    %544 = vmatmul.mubr.bf16.gmra.mxu0 %v194
    %v545 = vpop.f32.mrf.mxu0
    %v546 = vadd.f32 %v110, %v545
    %v547 = vpop.f32.mrf.mxu0
    %v548 = vadd.f32 %v114, %v547
    %v549 = vpop.f32.mrf.mxu0
    %v550 = vadd.f32 %v110, %v549
    %v551 = vpop.f32.mrf.mxu0
    %v552 = vadd.f32 %v114, %v551
    %553 = vmatprep.mubr.bf16.mxu0 0
    %554 = vmatmul.mubr.bf16.gmra.mxu0 %v197
    %v555 = vpop.f32.mrf.mxu0
    %v556 = vadd.f32 %v110, %v555
    %v557 = vpop.f32.mrf.mxu0
    %v558 = vadd.f32 %v114, %v557
    %v559 = vpop.f32.mrf.mxu0
    %v560 = vadd.f32 %v110, %v559
    %v561 = vpop.f32.mrf.mxu0
    %v562 = vadd.f32 %v114, %v561
    %563 = vmatprep.mubr.bf16.mxu0 0
    %564 = vmatmul.mubr.bf16.gmra.mxu0 %v200
    %v565 = vpop.f32.mrf.mxu0
    %v566 = vadd.f32 %v110, %v565
    %v567 = vpop.f32.mrf.mxu0
    %v568 = vadd.f32 %v114, %v567
    %v569 = vpop.f32.mrf.mxu0
    %v570 = vadd.f32 %v110, %v569
    %v571 = vpop.f32.mrf.mxu0
    %v572 = vadd.f32 %v114, %v571
    %573 = vmatprep.mubr.bf16.mxu0 0
    %574 = vmatmul.mubr.bf16.gmra.mxu0 %v203
    %v575 = vpop.f32.mrf.mxu0
    %v576 = vadd.f32 %v110, %v575
    %v577 = vpop.f32.mrf.mxu0
    %v578 = vadd.f32 %v114, %v577
    %v579 = vpop.f32.mrf.mxu0
    %v580 = vadd.f32 %v110, %v579
    %v581 = vpop.f32.mrf.mxu0
    %v582 = vadd.f32 %v114, %v581
    %583 = vmatprep.mubr.bf16.mxu0 0
    %584 = vmatmul.mubr.bf16.gmra.mxu0 %v206
    %v585 = vpop.f32.mrf.mxu0
    %v586 = vadd.f32 %v110, %v585
    %v587 = vpop.f32.mrf.mxu0
    %v588 = vadd.f32 %v114, %v587
    %v589 = vpop.f32.mrf.mxu0
    %v590 = vadd.f32 %v110, %v589
    %v591 = vpop.f32.mrf.mxu0
    %v592 = vadd.f32 %v114, %v591
    %593 = vdwg.mxu0
    %v594 = vmax.f32 %v243, 0.0
    %v595 = vmax.f32 %v245, 0.0
    %v596 = vmax.f32 %v436, 0.0
    %v597 = vmax.f32 %v438, 0.0
    %v598 = vmax.f32 %v247, 0.0
    %v599 = vmax.f32 %v249, 0.0
    %v600 = vmax.f32 %v440, 0.0
    %v601 = vmax.f32 %v442, 0.0
    %v602 = vmax.f32 %v253, 0.0
    %v603 = vmax.f32 %v255, 0.0
    %v604 = vmax.f32 %v446, 0.0
    %v605 = vmax.f32 %v448, 0.0
    %v606 = vmax.f32 %v257, 0.0
    %v607 = vmax.f32 %v259, 0.0
    %v608 = vmax.f32 %v450, 0.0
    %v609 = vmax.f32 %v452, 0.0
    %v610 = vmax.f32 %v263, 0.0
    %v611 = vmax.f32 %v265, 0.0
    %v612 = vmax.f32 %v456, 0.0
    %v613 = vmax.f32 %v458, 0.0
    %v614 = vmax.f32 %v267, 0.0
    %v615 = vmax.f32 %v269, 0.0
    %v616 = vmax.f32 %v460, 0.0
    %v617 = vmax.f32 %v462, 0.0
    %v618 = vmax.f32 %v273, 0.0
    %v619 = vmax.f32 %v275, 0.0
    %v620 = vmax.f32 %v466, 0.0
    %v621 = vmax.f32 %v468, 0.0
    %v622 = vmax.f32 %v277, 0.0
    %v623 = vmax.f32 %v279, 0.0
    %v624 = vmax.f32 %v470, 0.0
    %v625 = vmax.f32 %v472, 0.0
    %v626 = vmax.f32 %v283, 0.0
    %v627 = vmax.f32 %v285, 0.0
    %v628 = vmax.f32 %v476, 0.0
    %v629 = vmax.f32 %v478, 0.0
    %v630 = vmax.f32 %v287, 0.0
    %v631 = vmax.f32 %v289, 0.0
    %v632 = vmax.f32 %v480, 0.0
    %v633 = vmax.f32 %v482, 0.0
    %v634 = vmax.f32 %v293, 0.0
    %v635 = vmax.f32 %v295, 0.0
    %v636 = vmax.f32 %v486, 0.0
    %v637 = vmax.f32 %v488, 0.0
    %v638 = vmax.f32 %v297, 0.0
    %v639 = vmax.f32 %v299, 0.0
    %v640 = vmax.f32 %v490, 0.0
    %v641 = vmax.f32 %v492, 0.0
    %v642 = vmax.f32 %v303, 0.0
    %v643 = vmax.f32 %v305, 0.0
    %v644 = vmax.f32 %v496, 0.0
    %v645 = vmax.f32 %v498, 0.0
    %v646 = vmax.f32 %v307, 0.0
    %v647 = vmax.f32 %v309, 0.0
    %v648 = vmax.f32 %v500, 0.0
    %v649 = vmax.f32 %v502, 0.0
    %v650 = vmax.f32 %v313, 0.0
    %v651 = vmax.f32 %v315, 0.0
    %v652 = vmax.f32 %v506, 0.0
    %v653 = vmax.f32 %v508, 0.0
    %v654 = vmax.f32 %v317, 0.0
    %v655 = vmax.f32 %v319, 0.0
    %v656 = vmax.f32 %v510, 0.0
    %v657 = vmax.f32 %v512, 0.0
    %v658 = vmax.f32 %v323, 0.0
    %v659 = vmax.f32 %v325, 0.0
    %v660 = vmax.f32 %v516, 0.0
    %v661 = vmax.f32 %v518, 0.0
    %v662 = vmax.f32 %v327, 0.0
    %v663 = vmax.f32 %v329, 0.0
    %v664 = vmax.f32 %v520, 0.0
    %v665 = vmax.f32 %v522, 0.0
    %v666 = vmax.f32 %v333, 0.0
    %v667 = vmax.f32 %v335, 0.0
    %v668 = vmax.f32 %v526, 0.0
    %v669 = vmax.f32 %v528, 0.0
    %v670 = vmax.f32 %v337, 0.0
    %v671 = vmax.f32 %v339, 0.0
    %v672 = vmax.f32 %v530, 0.0
    %v673 = vmax.f32 %v532, 0.0
    %v674 = vmax.f32 %v343, 0.0
    %v675 = vmax.f32 %v345, 0.0
    %v676 = vmax.f32 %v536, 0.0
    %v677 = vmax.f32 %v538, 0.0
    %v678 = vmax.f32 %v347, 0.0
    %v679 = vmax.f32 %v349, 0.0
    %v680 = vmax.f32 %v540, 0.0
    %v681 = vmax.f32 %v542, 0.0
    %v682 = vmax.f32 %v353, 0.0
    %v683 = vmax.f32 %v355, 0.0
    %v684 = vmax.f32 %v546, 0.0
    %v685 = vmax.f32 %v548, 0.0
    %v686 = vmax.f32 %v357, 0.0
    %v687 = vmax.f32 %v359, 0.0
    %v688 = vmax.f32 %v550, 0.0
    %v689 = vmax.f32 %v552, 0.0
    %v690 = vmax.f32 %v363, 0.0
    %v691 = vmax.f32 %v365, 0.0
    %v692 = vmax.f32 %v556, 0.0
    %v693 = vmax.f32 %v558, 0.0
    %v694 = vmax.f32 %v367, 0.0
    %v695 = vmax.f32 %v369, 0.0
    %v696 = vmax.f32 %v560, 0.0
    %v697 = vmax.f32 %v562, 0.0
    %v698 = vmax.f32 %v373, 0.0
    %v699 = vmax.f32 %v375, 0.0
    %v700 = vmax.f32 %v566, 0.0
    %v701 = vmax.f32 %v568, 0.0
    %v702 = vmax.f32 %v377, 0.0
    %v703 = vmax.f32 %v379, 0.0
    %v704 = vmax.f32 %v570, 0.0
    %v705 = vmax.f32 %v572, 0.0
    %v706 = vmax.f32 %v383, 0.0
    %v707 = vmax.f32 %v385, 0.0
    %v708 = vmax.f32 %v576, 0.0
    %v709 = vmax.f32 %v578, 0.0
    %v710 = vmax.f32 %v387, 0.0
    %v711 = vmax.f32 %v389, 0.0
    %v712 = vmax.f32 %v580, 0.0
    %v713 = vmax.f32 %v582, 0.0
    %v714 = vmax.f32 %v393, 0.0
    %v715 = vmax.f32 %v395, 0.0
    %v716 = vmax.f32 %v586, 0.0
    %v717 = vmax.f32 %v588, 0.0
    %v718 = vmax.f32 %v397, 0.0
    %v719 = vmax.f32 %v399, 0.0
    %v720 = vmax.f32 %v590, 0.0
    %v721 = vmax.f32 %v592, 0.0
    %v722 = vpack.c.bf16 %v598, %v594
    %v723 = vpack.c.bf16 %v599, %v595
    %v724 = vpack.c.bf16 %v600, %v596
    %v725 = vpack.c.bf16 %v601, %v597
    %v726 = vpack.c.bf16 %v606, %v602
    %v727 = vpack.c.bf16 %v607, %v603
    %v728 = vpack.c.bf16 %v608, %v604
    %v729 = vpack.c.bf16 %v609, %v605
    %v730 = vpack.c.bf16 %v614, %v610
    %v731 = vpack.c.bf16 %v615, %v611
    %v732 = vpack.c.bf16 %v616, %v612
    %v733 = vpack.c.bf16 %v617, %v613
    %v734 = vpack.c.bf16 %v622, %v618
    %v735 = vpack.c.bf16 %v623, %v619
    %v736 = vpack.c.bf16 %v624, %v620
    %v737 = vpack.c.bf16 %v625, %v621
    %v738 = vpack.c.bf16 %v630, %v626
    %v739 = vpack.c.bf16 %v631, %v627
    %v740 = vpack.c.bf16 %v632, %v628
    %v741 = vpack.c.bf16 %v633, %v629
    %v742 = vpack.c.bf16 %v638, %v634
    %v743 = vpack.c.bf16 %v639, %v635
    %v744 = vpack.c.bf16 %v640, %v636
    %v745 = vpack.c.bf16 %v641, %v637
    %v746 = vpack.c.bf16 %v646, %v642
    %v747 = vpack.c.bf16 %v647, %v643
    %v748 = vpack.c.bf16 %v648, %v644
    %v749 = vpack.c.bf16 %v649, %v645
    %v750 = vpack.c.bf16 %v654, %v650
    %v751 = vpack.c.bf16 %v655, %v651
    %v752 = vpack.c.bf16 %v656, %v652
    %v753 = vpack.c.bf16 %v657, %v653
    %v754 = vpack.c.bf16 %v662, %v658
    %v755 = vpack.c.bf16 %v663, %v659
    %v756 = vpack.c.bf16 %v664, %v660
    %v757 = vpack.c.bf16 %v665, %v661
    %v758 = vpack.c.bf16 %v670, %v666
    %v759 = vpack.c.bf16 %v671, %v667
    %v760 = vpack.c.bf16 %v672, %v668
    %v761 = vpack.c.bf16 %v673, %v669
    %v762 = vpack.c.bf16 %v678, %v674
    %v763 = vpack.c.bf16 %v679, %v675
    %v764 = vpack.c.bf16 %v680, %v676
    %v765 = vpack.c.bf16 %v681, %v677
    %v766 = vpack.c.bf16 %v686, %v682
    %v767 = vpack.c.bf16 %v687, %v683
    %v768 = vpack.c.bf16 %v688, %v684
    %v769 = vpack.c.bf16 %v689, %v685
    %v770 = vpack.c.bf16 %v694, %v690
    %v771 = vpack.c.bf16 %v695, %v691
    %v772 = vpack.c.bf16 %v696, %v692
    %v773 = vpack.c.bf16 %v697, %v693
    %v774 = vpack.c.bf16 %v702, %v698
    %v775 = vpack.c.bf16 %v703, %v699
    %v776 = vpack.c.bf16 %v704, %v700
    %v777 = vpack.c.bf16 %v705, %v701
    %v778 = vpack.c.bf16 %v710, %v706
    %v779 = vpack.c.bf16 %v711, %v707
    %v780 = vpack.c.bf16 %v712, %v708
    %v781 = vpack.c.bf16 %v713, %v709
    %v782 = vpack.c.bf16 %v718, %v714
    %v783 = vpack.c.bf16 %v719, %v715
    %v784 = vpack.c.bf16 %v720, %v716
    %v785 = vpack.c.bf16 %v721, %v717
    %v786 = vld [vmem:[#allocation2] sm:$0xff]
    %v787 = vld [vmem:[#allocation2 + $0x8] sm:$0xff]
    %v788 = vld [vmem:[#allocation2 + $0x10] sm:$0xff]
    %v789 = vld [vmem:[#allocation2 + $0x18] sm:$0xff]
    %v790 = vld [vmem:[#allocation2 + $0x20] sm:$0xff]
    %v791 = vld [vmem:[#allocation2 + $0x28] sm:$0xff]
    %v792 = vld [vmem:[#allocation2 + $0x30] sm:$0xff]
    %v793 = vld [vmem:[#allocation2 + $0x38] sm:$0xff]
    %v794 = vld [vmem:[#allocation2 + $0x40] sm:$0xff]
    %v795 = vld [vmem:[#allocation2 + $0x48] sm:$0xff]
    %v796 = vld [vmem:[#allocation2 + $0x50] sm:$0xff]
    %v797 = vld [vmem:[#allocation2 + $0x58] sm:$0xff]
    %v798 = vld [vmem:[#allocation2 + $0x60] sm:$0xff]
    %v799 = vld [vmem:[#allocation2 + $0x68] sm:$0xff]
    %v800 = vld [vmem:[#allocation2 + $0x70] sm:$0xff]
    %v801 = vld [vmem:[#allocation2 + $0x78] sm:$0xff]
    %v802 = vld [vmem:[#allocation2 + $0x80] sm:$0xff]
    %v803 = vld [vmem:[#allocation2 + $0x88] sm:$0xff]
    %v804 = vld [vmem:[#allocation2 + $0x90] sm:$0xff]
    %v805 = vld [vmem:[#allocation2 + $0x98] sm:$0xff]
    %v806 = vld [vmem:[#allocation2 + $0xa0] sm:$0xff]
    %v807 = vld [vmem:[#allocation2 + $0xa8] sm:$0xff]
    %v808 = vld [vmem:[#allocation2 + $0xb0] sm:$0xff]
    %v809 = vld [vmem:[#allocation2 + $0xb8] sm:$0xff]
    %v810 = vld [vmem:[#allocation2 + $0xc0] sm:$0xff]
    %v811 = vld [vmem:[#allocation2 + $0xc8] sm:$0xff]
    %v812 = vld [vmem:[#allocation2 + $0xd0] sm:$0xff]
    %v813 = vld [vmem:[#allocation2 + $0xd8] sm:$0xff]
    %v814 = vld [vmem:[#allocation2 + $0xe0] sm:$0xff]
    %v815 = vld [vmem:[#allocation2 + $0xe8] sm:$0xff]
    %v816 = vld [vmem:[#allocation2 + $0xf0] sm:$0xff]
    %v817 = vld [vmem:[#allocation2 + $0xf8] sm:$0xff]
    %v818 = vld [vmem:[#allocation2 + $0x100] sm:$0xff]
    %v819 = vld [vmem:[#allocation2 + $0x108] sm:$0xff]
    %v820 = vld [vmem:[#allocation2 + $0x110] sm:$0xff]
    %v821 = vld [vmem:[#allocation2 + $0x118] sm:$0xff]
    %v822 = vld [vmem:[#allocation2 + $0x120] sm:$0xff]
    %v823 = vld [vmem:[#allocation2 + $0x128] sm:$0xff]
    %v824 = vld [vmem:[#allocation2 + $0x130] sm:$0xff]
    %v825 = vld [vmem:[#allocation2 + $0x138] sm:$0xff]
    %v826 = vld [vmem:[#allocation2 + $0x140] sm:$0xff]
    %v827 = vld [vmem:[#allocation2 + $0x148] sm:$0xff]
    %v828 = vld [vmem:[#allocation2 + $0x150] sm:$0xff]
    %v829 = vld [vmem:[#allocation2 + $0x158] sm:$0xff]
    %v830 = vld [vmem:[#allocation2 + $0x160] sm:$0xff]
    %v831 = vld [vmem:[#allocation2 + $0x168] sm:$0xff]
    %v832 = vld [vmem:[#allocation2 + $0x170] sm:$0xff]
    %v833 = vld [vmem:[#allocation2 + $0x178] sm:$0xff]
    %v834 = vld [vmem:[#allocation2 + $0x180] sm:$0xff]
    %v835 = vld [vmem:[#allocation2 + $0x188] sm:$0xff]
    %v836 = vld [vmem:[#allocation2 + $0x190] sm:$0xff]
    %v837 = vld [vmem:[#allocation2 + $0x198] sm:$0xff]
    %v838 = vld [vmem:[#allocation2 + $0x1a0] sm:$0xff]
    %v839 = vld [vmem:[#allocation2 + $0x1a8] sm:$0xff]
    %v840 = vld [vmem:[#allocation2 + $0x1b0] sm:$0xff]
    %v841 = vld [vmem:[#allocation2 + $0x1b8] sm:$0xff]
    %v842 = vld [vmem:[#allocation2 + $0x1c0] sm:$0xff]
    %v843 = vld [vmem:[#allocation2 + $0x1c8] sm:$0xff]
    %v844 = vld [vmem:[#allocation2 + $0x1d0] sm:$0xff]
    %v845 = vld [vmem:[#allocation2 + $0x1d8] sm:$0xff]
    %v846 = vld [vmem:[#allocation2 + $0x1e0] sm:$0xff]
    %v847 = vld [vmem:[#allocation2 + $0x1e8] sm:$0xff]
    %v848 = vld [vmem:[#allocation2 + $0x1f0] sm:$0xff]
    %v849 = vld [vmem:[#allocation2 + $0x1f8] sm:$0xff]
    %v850 = vld [vmem:[#allocation2 + $0x200] sm:$0xff]
    %v851 = vld [vmem:[#allocation2 + $0x208] sm:$0xff]
    %v852 = vld [vmem:[#allocation2 + $0x210] sm:$0xff]
    %v853 = vld [vmem:[#allocation2 + $0x218] sm:$0xff]
    %v854 = vld [vmem:[#allocation2 + $0x220] sm:$0xff]
    %v855 = vld [vmem:[#allocation2 + $0x228] sm:$0xff]
    %v856 = vld [vmem:[#allocation2 + $0x230] sm:$0xff]
    %v857 = vld [vmem:[#allocation2 + $0x238] sm:$0xff]
    %v858 = vld [vmem:[#allocation2 + $0x240] sm:$0xff]
    %v859 = vld [vmem:[#allocation2 + $0x248] sm:$0xff]
    %v860 = vld [vmem:[#allocation2 + $0x250] sm:$0xff]
    %v861 = vld [vmem:[#allocation2 + $0x258] sm:$0xff]
    %v862 = vld [vmem:[#allocation2 + $0x260] sm:$0xff]
    %v863 = vld [vmem:[#allocation2 + $0x268] sm:$0xff]
    %v864 = vld [vmem:[#allocation2 + $0x270] sm:$0xff]
    %v865 = vld [vmem:[#allocation2 + $0x278] sm:$0xff]
    %v866 = vld [vmem:[#allocation2 + $0x280] sm:$0xff]
    %v867 = vld [vmem:[#allocation2 + $0x288] sm:$0xff]
    %v868 = vld [vmem:[#allocation2 + $0x290] sm:$0xff]
    %v869 = vld [vmem:[#allocation2 + $0x298] sm:$0xff]
    %v870 = vld [vmem:[#allocation2 + $0x2a0] sm:$0xff]
    %v871 = vld [vmem:[#allocation2 + $0x2a8] sm:$0xff]
    %v872 = vld [vmem:[#allocation2 + $0x2b0] sm:$0xff]
    %v873 = vld [vmem:[#allocation2 + $0x2b8] sm:$0xff]
    %v874 = vld [vmem:[#allocation2 + $0x2c0] sm:$0xff]
    %v875 = vld [vmem:[#allocation2 + $0x2c8] sm:$0xff]
    %v876 = vld [vmem:[#allocation2 + $0x2d0] sm:$0xff]
    %v877 = vld [vmem:[#allocation2 + $0x2d8] sm:$0xff]
    %v878 = vld [vmem:[#allocation2 + $0x2e0] sm:$0xff]
    %v879 = vld [vmem:[#allocation2 + $0x2e8] sm:$0xff]
    %v880 = vld [vmem:[#allocation2 + $0x2f0] sm:$0xff]
    %v881 = vld [vmem:[#allocation2 + $0x2f8] sm:$0xff]
    %v882 = vld [vmem:[#allocation2 + $0x300] sm:$0xff]
    %v883 = vld [vmem:[#allocation2 + $0x308] sm:$0xff]
    %v884 = vld [vmem:[#allocation2 + $0x310] sm:$0xff]
    %v885 = vld [vmem:[#allocation2 + $0x318] sm:$0xff]
    %v886 = vld [vmem:[#allocation2 + $0x320] sm:$0xff]
    %v887 = vld [vmem:[#allocation2 + $0x328] sm:$0xff]
    %v888 = vld [vmem:[#allocation2 + $0x330] sm:$0xff]
    %v889 = vld [vmem:[#allocation2 + $0x338] sm:$0xff]
    %v890 = vld [vmem:[#allocation2 + $0x340] sm:$0xff]
    %v891 = vld [vmem:[#allocation2 + $0x348] sm:$0xff]
    %v892 = vld [vmem:[#allocation2 + $0x350] sm:$0xff]
    %v893 = vld [vmem:[#allocation2 + $0x358] sm:$0xff]
    %v894 = vld [vmem:[#allocation2 + $0x360] sm:$0xff]
    %v895 = vld [vmem:[#allocation2 + $0x368] sm:$0xff]
    %v896 = vld [vmem:[#allocation2 + $0x370] sm:$0xff]
    %v897 = vld [vmem:[#allocation2 + $0x378] sm:$0xff]
    %v898 = vld [vmem:[#allocation2 + $0x380] sm:$0xff]
    %v899 = vld [vmem:[#allocation2 + $0x388] sm:$0xff]
    %v900 = vld [vmem:[#allocation2 + $0x390] sm:$0xff]
    %v901 = vld [vmem:[#allocation2 + $0x398] sm:$0xff]
    %v902 = vld [vmem:[#allocation2 + $0x3a0] sm:$0xff]
    %v903 = vld [vmem:[#allocation2 + $0x3a8] sm:$0xff]
    %v904 = vld [vmem:[#allocation2 + $0x3b0] sm:$0xff]
    %v905 = vld [vmem:[#allocation2 + $0x3b8] sm:$0xff]
    %v906 = vld [vmem:[#allocation2 + $0x3c0] sm:$0xff]
    %v907 = vld [vmem:[#allocation2 + $0x3c8] sm:$0xff]
    %v908 = vld [vmem:[#allocation2 + $0x3d0] sm:$0xff]
    %v909 = vld [vmem:[#allocation2 + $0x3d8] sm:$0xff]
    %v910 = vld [vmem:[#allocation2 + $0x3e0] sm:$0xff]
    %v911 = vld [vmem:[#allocation2 + $0x3e8] sm:$0xff]
    %v912 = vld [vmem:[#allocation2 + $0x3f0] sm:$0xff]
    %v913 = vld [vmem:[#allocation2 + $0x3f8] sm:$0xff]
    %v914 = vld [vmem:[%s4] sm:$0xf]
    %v916 = vlaneseq
    %v917 = vshrl.u32 %v916, 7
    %v918 = vsub.s32 0, %v917
    %v919 = vrot.slane %v914, %v918
    %v920 = vlaneseq
    %v921 = vshrl.u32 %v920, 7
    %v922 = vsub.s32 1, %v921
    %v923 = vrot.slane %v914, %v922
    %v924 = vlaneseq
    %v925 = vshrl.u32 %v924, 7
    %v926 = vsub.s32 2, %v925
    %v927 = vrot.slane %v914, %v926
    %v928 = vlaneseq
    %v929 = vshrl.u32 %v928, 7
    %v930 = vsub.s32 3, %v929
    %v931 = vrot.slane %v914, %v930
    %v1064 = vunpack.c.l.b16 %v786
    %v1065 = vunpack.c.h.b16 %v786
    %v1066 = vunpack.c.l.b16 %v787
    %v1067 = vunpack.c.h.b16 %v787
    %v1068 = vunpack.c.l.b16 %v788
    %v1069 = vunpack.c.h.b16 %v788
    %v1070 = vunpack.c.l.b16 %v789
    %v1071 = vunpack.c.h.b16 %v789
    %v1072 = vunpack.c.l.b16 %v790
    %v1073 = vunpack.c.h.b16 %v790
    %v1074 = vunpack.c.l.b16 %v791
    %v1075 = vunpack.c.h.b16 %v791
    %v1076 = vunpack.c.l.b16 %v792
    %v1077 = vunpack.c.h.b16 %v792
    %v1078 = vunpack.c.l.b16 %v793
    %v1079 = vunpack.c.h.b16 %v793
    %v1080 = vunpack.c.l.b16 %v794
    %v1081 = vunpack.c.h.b16 %v794
    %v1082 = vunpack.c.l.b16 %v795
    %v1083 = vunpack.c.h.b16 %v795
    %v1084 = vunpack.c.l.b16 %v796
    %v1085 = vunpack.c.h.b16 %v796
    %v1086 = vunpack.c.l.b16 %v797
    %v1087 = vunpack.c.h.b16 %v797
    %v1088 = vunpack.c.l.b16 %v798
    %v1089 = vunpack.c.h.b16 %v798
    %v1090 = vunpack.c.l.b16 %v799
    %v1091 = vunpack.c.h.b16 %v799
    %v1092 = vunpack.c.l.b16 %v800
    %v1093 = vunpack.c.h.b16 %v800
    %v1094 = vunpack.c.l.b16 %v801
    %v1095 = vunpack.c.h.b16 %v801
    %v1096 = vunpack.c.l.b16 %v802
    %v1097 = vunpack.c.h.b16 %v802
    %v1098 = vunpack.c.l.b16 %v803
    %v1099 = vunpack.c.h.b16 %v803
    %v1100 = vunpack.c.l.b16 %v804
    %v1101 = vunpack.c.h.b16 %v804
    %v1102 = vunpack.c.l.b16 %v805
    %v1103 = vunpack.c.h.b16 %v805
    %v1104 = vunpack.c.l.b16 %v806
    %v1105 = vunpack.c.h.b16 %v806
    %v1106 = vunpack.c.l.b16 %v807
    %v1107 = vunpack.c.h.b16 %v807
    %v1108 = vunpack.c.l.b16 %v808
    %v1109 = vunpack.c.h.b16 %v808
    %v1110 = vunpack.c.l.b16 %v809
    %v1111 = vunpack.c.h.b16 %v809
    %v1112 = vunpack.c.l.b16 %v810
    %v1113 = vunpack.c.h.b16 %v810
    %v1114 = vunpack.c.l.b16 %v811
    %v1115 = vunpack.c.h.b16 %v811
    %v1116 = vunpack.c.l.b16 %v812
    %v1117 = vunpack.c.h.b16 %v812
    %v1118 = vunpack.c.l.b16 %v813
    %v1119 = vunpack.c.h.b16 %v813
    %v1120 = vunpack.c.l.b16 %v814
    %v1121 = vunpack.c.h.b16 %v814
    %v1122 = vunpack.c.l.b16 %v815
    %v1123 = vunpack.c.h.b16 %v815
    %v1124 = vunpack.c.l.b16 %v816
    %v1125 = vunpack.c.h.b16 %v816
    %v1126 = vunpack.c.l.b16 %v817
    %v1127 = vunpack.c.h.b16 %v817
    %v1128 = vunpack.c.l.b16 %v818
    %v1129 = vunpack.c.h.b16 %v818
    %v1130 = vunpack.c.l.b16 %v819
    %v1131 = vunpack.c.h.b16 %v819
    %v1132 = vunpack.c.l.b16 %v820
    %v1133 = vunpack.c.h.b16 %v820
    %v1134 = vunpack.c.l.b16 %v821
    %v1135 = vunpack.c.h.b16 %v821
    %v1136 = vunpack.c.l.b16 %v822
    %v1137 = vunpack.c.h.b16 %v822
    %v1138 = vunpack.c.l.b16 %v823
    %v1139 = vunpack.c.h.b16 %v823
    %v1140 = vunpack.c.l.b16 %v824
    %v1141 = vunpack.c.h.b16 %v824
    %v1142 = vunpack.c.l.b16 %v825
    %v1143 = vunpack.c.h.b16 %v825
    %v1144 = vunpack.c.l.b16 %v826
    %v1145 = vunpack.c.h.b16 %v826
    %v1146 = vunpack.c.l.b16 %v827
    %v1147 = vunpack.c.h.b16 %v827
    %v1148 = vunpack.c.l.b16 %v828
    %v1149 = vunpack.c.h.b16 %v828
    %v1150 = vunpack.c.l.b16 %v829
    %v1151 = vunpack.c.h.b16 %v829
    %v1152 = vunpack.c.l.b16 %v830
    %v1153 = vunpack.c.h.b16 %v830
    %v1154 = vunpack.c.l.b16 %v831
    %v1155 = vunpack.c.h.b16 %v831
    %v1156 = vunpack.c.l.b16 %v832
    %v1157 = vunpack.c.h.b16 %v832
    %v1158 = vunpack.c.l.b16 %v833
    %v1159 = vunpack.c.h.b16 %v833
    %v1160 = vunpack.c.l.b16 %v834
    %v1161 = vunpack.c.h.b16 %v834
    %v1162 = vunpack.c.l.b16 %v835
    %v1163 = vunpack.c.h.b16 %v835
    %v1164 = vunpack.c.l.b16 %v836
    %v1165 = vunpack.c.h.b16 %v836
    %v1166 = vunpack.c.l.b16 %v837
    %v1167 = vunpack.c.h.b16 %v837
    %v1168 = vunpack.c.l.b16 %v838
    %v1169 = vunpack.c.h.b16 %v838
    %v1170 = vunpack.c.l.b16 %v839
    %v1171 = vunpack.c.h.b16 %v839
    %v1172 = vunpack.c.l.b16 %v840
    %v1173 = vunpack.c.h.b16 %v840
    %v1174 = vunpack.c.l.b16 %v841
    %v1175 = vunpack.c.h.b16 %v841
    %v1176 = vunpack.c.l.b16 %v842
    %v1177 = vunpack.c.h.b16 %v842
    %v1178 = vunpack.c.l.b16 %v843
    %v1179 = vunpack.c.h.b16 %v843
    %v1180 = vunpack.c.l.b16 %v844
    %v1181 = vunpack.c.h.b16 %v844
    %v1182 = vunpack.c.l.b16 %v845
    %v1183 = vunpack.c.h.b16 %v845
    %v1184 = vunpack.c.l.b16 %v846
    %v1185 = vunpack.c.h.b16 %v846
    %v1186 = vunpack.c.l.b16 %v847
    %v1187 = vunpack.c.h.b16 %v847
    %v1188 = vunpack.c.l.b16 %v848
    %v1189 = vunpack.c.h.b16 %v848
    %v1190 = vunpack.c.l.b16 %v849
    %v1191 = vunpack.c.h.b16 %v849
    %v1192 = vunpack.c.l.b16 %v850
    %v1193 = vunpack.c.h.b16 %v850
    %v1194 = vunpack.c.l.b16 %v851
    %v1195 = vunpack.c.h.b16 %v851
    %v1196 = vunpack.c.l.b16 %v852
    %v1197 = vunpack.c.h.b16 %v852
    %v1198 = vunpack.c.l.b16 %v853
    %v1199 = vunpack.c.h.b16 %v853
    %v1200 = vunpack.c.l.b16 %v854
    %v1201 = vunpack.c.h.b16 %v854
    %v1202 = vunpack.c.l.b16 %v855
    %v1203 = vunpack.c.h.b16 %v855
    %v1204 = vunpack.c.l.b16 %v856
    %v1205 = vunpack.c.h.b16 %v856
    %v1206 = vunpack.c.l.b16 %v857
    %v1207 = vunpack.c.h.b16 %v857
    %v1208 = vunpack.c.l.b16 %v858
    %v1209 = vunpack.c.h.b16 %v858
    %v1210 = vunpack.c.l.b16 %v859
    %v1211 = vunpack.c.h.b16 %v859
    %v1212 = vunpack.c.l.b16 %v860
    %v1213 = vunpack.c.h.b16 %v860
    %v1214 = vunpack.c.l.b16 %v861
    %v1215 = vunpack.c.h.b16 %v861
    %v1216 = vunpack.c.l.b16 %v862
    %v1217 = vunpack.c.h.b16 %v862
    %v1218 = vunpack.c.l.b16 %v863
    %v1219 = vunpack.c.h.b16 %v863
    %v1220 = vunpack.c.l.b16 %v864
    %v1221 = vunpack.c.h.b16 %v864
    %v1222 = vunpack.c.l.b16 %v865
    %v1223 = vunpack.c.h.b16 %v865
    %v1224 = vunpack.c.l.b16 %v866
    %v1225 = vunpack.c.h.b16 %v866
    %v1226 = vunpack.c.l.b16 %v867
    %v1227 = vunpack.c.h.b16 %v867
    %v1228 = vunpack.c.l.b16 %v868
    %v1229 = vunpack.c.h.b16 %v868
    %v1230 = vunpack.c.l.b16 %v869
    %v1231 = vunpack.c.h.b16 %v869
    %v1232 = vunpack.c.l.b16 %v870
    %v1233 = vunpack.c.h.b16 %v870
    %v1234 = vunpack.c.l.b16 %v871
    %v1235 = vunpack.c.h.b16 %v871
    %v1236 = vunpack.c.l.b16 %v872
    %v1237 = vunpack.c.h.b16 %v872
    %v1238 = vunpack.c.l.b16 %v873
    %v1239 = vunpack.c.h.b16 %v873
    %v1240 = vunpack.c.l.b16 %v874
    %v1241 = vunpack.c.h.b16 %v874
    %v1242 = vunpack.c.l.b16 %v875
    %v1243 = vunpack.c.h.b16 %v875
    %v1244 = vunpack.c.l.b16 %v876
    %v1245 = vunpack.c.h.b16 %v876
    %v1246 = vunpack.c.l.b16 %v877
    %v1247 = vunpack.c.h.b16 %v877
    %v1248 = vunpack.c.l.b16 %v878
    %v1249 = vunpack.c.h.b16 %v878
    %v1250 = vunpack.c.l.b16 %v879
    %v1251 = vunpack.c.h.b16 %v879
    %v1252 = vunpack.c.l.b16 %v880
    %v1253 = vunpack.c.h.b16 %v880
    %v1254 = vunpack.c.l.b16 %v881
    %v1255 = vunpack.c.h.b16 %v881
    %v1256 = vunpack.c.l.b16 %v882
    %v1257 = vunpack.c.h.b16 %v882
    %v1258 = vunpack.c.l.b16 %v883
    %v1259 = vunpack.c.h.b16 %v883
    %v1260 = vunpack.c.l.b16 %v884
    %v1261 = vunpack.c.h.b16 %v884
    %v1262 = vunpack.c.l.b16 %v885
    %v1263 = vunpack.c.h.b16 %v885
    %v1264 = vunpack.c.l.b16 %v886
    %v1265 = vunpack.c.h.b16 %v886
    %v1266 = vunpack.c.l.b16 %v887
    %v1267 = vunpack.c.h.b16 %v887
    %v1268 = vunpack.c.l.b16 %v888
    %v1269 = vunpack.c.h.b16 %v888
    %v1270 = vunpack.c.l.b16 %v889
    %v1271 = vunpack.c.h.b16 %v889
    %v1272 = vunpack.c.l.b16 %v890
    %v1273 = vunpack.c.h.b16 %v890
    %v1274 = vunpack.c.l.b16 %v891
    %v1275 = vunpack.c.h.b16 %v891
    %v1276 = vunpack.c.l.b16 %v892
    %v1277 = vunpack.c.h.b16 %v892
    %v1278 = vunpack.c.l.b16 %v893
    %v1279 = vunpack.c.h.b16 %v893
    %v1280 = vunpack.c.l.b16 %v894
    %v1281 = vunpack.c.h.b16 %v894
    %v1282 = vunpack.c.l.b16 %v895
    %v1283 = vunpack.c.h.b16 %v895
    %v1284 = vunpack.c.l.b16 %v896
    %v1285 = vunpack.c.h.b16 %v896
    %v1286 = vunpack.c.l.b16 %v897
    %v1287 = vunpack.c.h.b16 %v897
    %v1288 = vunpack.c.l.b16 %v898
    %v1289 = vunpack.c.h.b16 %v898
    %v1290 = vunpack.c.l.b16 %v899
    %v1291 = vunpack.c.h.b16 %v899
    %v1292 = vunpack.c.l.b16 %v900
    %v1293 = vunpack.c.h.b16 %v900
    %v1294 = vunpack.c.l.b16 %v901
    %v1295 = vunpack.c.h.b16 %v901
    %v1296 = vunpack.c.l.b16 %v902
    %v1297 = vunpack.c.h.b16 %v902
    %v1298 = vunpack.c.l.b16 %v903
    %v1299 = vunpack.c.h.b16 %v903
    %v1300 = vunpack.c.l.b16 %v904
    %v1301 = vunpack.c.h.b16 %v904
    %v1302 = vunpack.c.l.b16 %v905
    %v1303 = vunpack.c.h.b16 %v905
    %v1304 = vunpack.c.l.b16 %v906
    %v1305 = vunpack.c.h.b16 %v906
    %v1306 = vunpack.c.l.b16 %v907
    %v1307 = vunpack.c.h.b16 %v907
    %v1308 = vunpack.c.l.b16 %v908
    %v1309 = vunpack.c.h.b16 %v908
    %v1310 = vunpack.c.l.b16 %v909
    %v1311 = vunpack.c.h.b16 %v909
    %v1312 = vunpack.c.l.b16 %v910
    %v1313 = vunpack.c.h.b16 %v910
    %v1314 = vunpack.c.l.b16 %v911
    %v1315 = vunpack.c.h.b16 %v911
    %v1316 = vunpack.c.l.b16 %v912
    %v1317 = vunpack.c.h.b16 %v912
    %v1318 = vunpack.c.l.b16 %v913
    %v1319 = vunpack.c.h.b16 %v913
    %v1320 = vpack.c.b16 %v1068, %v1064
    %v1321 = vpack.c.b16 %v1069, %v1065
    %v1322 = vpack.c.b16 %v1070, %v1066
    %v1323 = vpack.c.b16 %v1071, %v1067
    %v1324 = vpack.c.b16 %v1076, %v1072
    %v1325 = vpack.c.b16 %v1077, %v1073
    %v1326 = vpack.c.b16 %v1078, %v1074
    %v1327 = vpack.c.b16 %v1079, %v1075
    %v1328 = vpack.c.b16 %v1084, %v1080
    %v1329 = vpack.c.b16 %v1085, %v1081
    %v1330 = vpack.c.b16 %v1086, %v1082
    %v1331 = vpack.c.b16 %v1087, %v1083
    %v1332 = vpack.c.b16 %v1092, %v1088
    %v1333 = vpack.c.b16 %v1093, %v1089
    %v1334 = vpack.c.b16 %v1094, %v1090
    %v1335 = vpack.c.b16 %v1095, %v1091
    %v1336 = vpack.c.b16 %v1100, %v1096
    %v1337 = vpack.c.b16 %v1101, %v1097
    %v1338 = vpack.c.b16 %v1102, %v1098
    %v1339 = vpack.c.b16 %v1103, %v1099
    %v1340 = vpack.c.b16 %v1108, %v1104
    %v1341 = vpack.c.b16 %v1109, %v1105
    %v1342 = vpack.c.b16 %v1110, %v1106
    %v1343 = vpack.c.b16 %v1111, %v1107
    %v1344 = vpack.c.b16 %v1116, %v1112
    %v1345 = vpack.c.b16 %v1117, %v1113
    %v1346 = vpack.c.b16 %v1118, %v1114
    %v1347 = vpack.c.b16 %v1119, %v1115
    %v1348 = vpack.c.b16 %v1124, %v1120
    %v1349 = vpack.c.b16 %v1125, %v1121
    %v1350 = vpack.c.b16 %v1126, %v1122
    %v1351 = vpack.c.b16 %v1127, %v1123
    %v1352 = vpack.c.b16 %v1132, %v1128
    %v1353 = vpack.c.b16 %v1133, %v1129
    %v1354 = vpack.c.b16 %v1134, %v1130
    %v1355 = vpack.c.b16 %v1135, %v1131
    %v1356 = vpack.c.b16 %v1140, %v1136
    %v1357 = vpack.c.b16 %v1141, %v1137
    %v1358 = vpack.c.b16 %v1142, %v1138
    %v1359 = vpack.c.b16 %v1143, %v1139
    %v1360 = vpack.c.b16 %v1148, %v1144
    %v1361 = vpack.c.b16 %v1149, %v1145
    %v1362 = vpack.c.b16 %v1150, %v1146
    %v1363 = vpack.c.b16 %v1151, %v1147
    %v1364 = vpack.c.b16 %v1156, %v1152
    %v1365 = vpack.c.b16 %v1157, %v1153
    %v1366 = vpack.c.b16 %v1158, %v1154
    %v1367 = vpack.c.b16 %v1159, %v1155
    %v1368 = vpack.c.b16 %v1164, %v1160
    %v1369 = vpack.c.b16 %v1165, %v1161
    %v1370 = vpack.c.b16 %v1166, %v1162
    %v1371 = vpack.c.b16 %v1167, %v1163
    %v1372 = vpack.c.b16 %v1172, %v1168
    %v1373 = vpack.c.b16 %v1173, %v1169
    %v1374 = vpack.c.b16 %v1174, %v1170
    %v1375 = vpack.c.b16 %v1175, %v1171
    %v1376 = vpack.c.b16 %v1180, %v1176
    %v1377 = vpack.c.b16 %v1181, %v1177
    %v1378 = vpack.c.b16 %v1182, %v1178
    %v1379 = vpack.c.b16 %v1183, %v1179
    %v1380 = vpack.c.b16 %v1188, %v1184
    %v1381 = vpack.c.b16 %v1189, %v1185
    %v1382 = vpack.c.b16 %v1190, %v1186
    %v1383 = vpack.c.b16 %v1191, %v1187
    %v1384 = vpack.c.b16 %v1196, %v1192
    %v1385 = vpack.c.b16 %v1197, %v1193
    %v1386 = vpack.c.b16 %v1198, %v1194
    %v1387 = vpack.c.b16 %v1199, %v1195
    %v1388 = vpack.c.b16 %v1204, %v1200
    %v1389 = vpack.c.b16 %v1205, %v1201
    %v1390 = vpack.c.b16 %v1206, %v1202
    %v1391 = vpack.c.b16 %v1207, %v1203
    %v1392 = vpack.c.b16 %v1212, %v1208
    %v1393 = vpack.c.b16 %v1213, %v1209
    %v1394 = vpack.c.b16 %v1214, %v1210
    %v1395 = vpack.c.b16 %v1215, %v1211
    %v1396 = vpack.c.b16 %v1220, %v1216
    %v1397 = vpack.c.b16 %v1221, %v1217
    %v1398 = vpack.c.b16 %v1222, %v1218
    %v1399 = vpack.c.b16 %v1223, %v1219
    %v1400 = vpack.c.b16 %v1228, %v1224
    %v1401 = vpack.c.b16 %v1229, %v1225
    %v1402 = vpack.c.b16 %v1230, %v1226
    %v1403 = vpack.c.b16 %v1231, %v1227
    %v1404 = vpack.c.b16 %v1236, %v1232
    %v1405 = vpack.c.b16 %v1237, %v1233
    %v1406 = vpack.c.b16 %v1238, %v1234
    %v1407 = vpack.c.b16 %v1239, %v1235
    %v1408 = vpack.c.b16 %v1244, %v1240
    %v1409 = vpack.c.b16 %v1245, %v1241
    %v1410 = vpack.c.b16 %v1246, %v1242
    %v1411 = vpack.c.b16 %v1247, %v1243
    %v1412 = vpack.c.b16 %v1252, %v1248
    %v1413 = vpack.c.b16 %v1253, %v1249
    %v1414 = vpack.c.b16 %v1254, %v1250
    %v1415 = vpack.c.b16 %v1255, %v1251
    %v1416 = vpack.c.b16 %v1260, %v1256
    %v1417 = vpack.c.b16 %v1261, %v1257
    %v1418 = vpack.c.b16 %v1262, %v1258
    %v1419 = vpack.c.b16 %v1263, %v1259
    %v1420 = vpack.c.b16 %v1268, %v1264
    %v1421 = vpack.c.b16 %v1269, %v1265
    %v1422 = vpack.c.b16 %v1270, %v1266
    %v1423 = vpack.c.b16 %v1271, %v1267
    %v1424 = vpack.c.b16 %v1276, %v1272
    %v1425 = vpack.c.b16 %v1277, %v1273
    %v1426 = vpack.c.b16 %v1278, %v1274
    %v1427 = vpack.c.b16 %v1279, %v1275
    %v1428 = vpack.c.b16 %v1284, %v1280
    %v1429 = vpack.c.b16 %v1285, %v1281
    %v1430 = vpack.c.b16 %v1286, %v1282
    %v1431 = vpack.c.b16 %v1287, %v1283
    %v1432 = vpack.c.b16 %v1292, %v1288
    %v1433 = vpack.c.b16 %v1293, %v1289
    %v1434 = vpack.c.b16 %v1294, %v1290
    %v1435 = vpack.c.b16 %v1295, %v1291
    %v1436 = vpack.c.b16 %v1300, %v1296
    %v1437 = vpack.c.b16 %v1301, %v1297
    %v1438 = vpack.c.b16 %v1302, %v1298
    %v1439 = vpack.c.b16 %v1303, %v1299
    %v1440 = vpack.c.b16 %v1308, %v1304
    %v1441 = vpack.c.b16 %v1309, %v1305
    %v1442 = vpack.c.b16 %v1310, %v1306
    %v1443 = vpack.c.b16 %v1311, %v1307
    %v1444 = vpack.c.b16 %v1316, %v1312
    %v1445 = vpack.c.b16 %v1317, %v1313
    %v1446 = vpack.c.b16 %v1318, %v1314
    %v1447 = vpack.c.b16 %v1319, %v1315
    %1576 = vmatprep.subr.bf16.mxu0 %v1349
    %1577 = vmatpush1.bf16.msra.mxu0 %v1348
    %1578 = vmatprep.subr.bf16.mxu0 %v1345
    %1579 = vmatpush1.bf16.msra.mxu0 %v1344
    %1580 = vmatprep.subr.bf16.mxu0 %v1341
    %1581 = vmatpush1.bf16.msra.mxu0 %v1340
    %1582 = vmatprep.subr.bf16.mxu0 %v1337
    %1583 = vmatpush1.bf16.msra.mxu0 %v1336
    %1584 = vmatprep.subr.bf16.mxu0 %v1333
    %1585 = vmatpush1.bf16.msra.mxu0 %v1332
    %1586 = vmatprep.subr.bf16.mxu0 %v1329
    %1587 = vmatpush1.bf16.msra.mxu0 %v1328
    %1588 = vmatprep.subr.bf16.mxu0 %v1325
    %1589 = vmatpush1.bf16.msra.mxu0 %v1324
    %1590 = vmatprep.subr.bf16.mxu0 %v1321
    %1591 = vmatpush1.bf16.msra.mxu0 %v1320
    %1592 = vmatprep.subr.bf16.mxu0 %v1381
    %1593 = vmatpush2.bf16.msra.mxu0 %v1380
    %1594 = vmatprep.subr.bf16.mxu0 %v1377
    %1595 = vmatpush2.bf16.msra.mxu0 %v1376
    %1596 = vmatprep.subr.bf16.mxu0 %v1373
    %1597 = vmatpush2.bf16.msra.mxu0 %v1372
    %1598 = vmatprep.subr.bf16.mxu0 %v1369
    %1599 = vmatpush2.bf16.msra.mxu0 %v1368
    %1600 = vmatprep.subr.bf16.mxu0 %v1365
    %1601 = vmatpush2.bf16.msra.mxu0 %v1364
    %1602 = vmatprep.subr.bf16.mxu0 %v1361
    %1603 = vmatpush2.bf16.msra.mxu0 %v1360
    %1604 = vmatprep.subr.bf16.mxu0 %v1357
    %1605 = vmatpush2.bf16.msra.mxu0 %v1356
    %1606 = vmatprep.subr.bf16.mxu0 %v1353
    %1607 = vmatpush2.bf16.msra.mxu0 %v1352
    %1608 = vmatprep.mubr.bf16.mxu0 %v723
    %1609 = vmatmul.mubr.bf16.gmra.mxu0 %v722
    %v1610 = vpop.f32.mrf.mxu0
    %v1611 = vadd.f32 %v919, %v1610
    %v1612 = vpop.f32.mrf.mxu0
    %v1613 = vadd.f32 %v923, %v1612
    %v1614 = vpop.f32.mrf.mxu0
    %v1615 = vadd.f32 %v919, %v1614
    %v1616 = vpop.f32.mrf.mxu0
    %v1617 = vadd.f32 %v923, %v1616
    %1618 = vmatprep.mubr.bf16.mxu0 %v727
    %1619 = vmatmul.mubr.bf16.gmra.mxu0 %v726
    %v1620 = vpop.f32.mrf.mxu0
    %v1621 = vadd.f32 %v919, %v1620
    %v1622 = vpop.f32.mrf.mxu0
    %v1623 = vadd.f32 %v923, %v1622
    %v1624 = vpop.f32.mrf.mxu0
    %v1625 = vadd.f32 %v919, %v1624
    %v1626 = vpop.f32.mrf.mxu0
    %v1627 = vadd.f32 %v923, %v1626
    %1628 = vmatprep.mubr.bf16.mxu0 %v731
    %1629 = vmatmul.mubr.bf16.gmra.mxu0 %v730
    %v1630 = vpop.f32.mrf.mxu0
    %v1631 = vadd.f32 %v919, %v1630
    %v1632 = vpop.f32.mrf.mxu0
    %v1633 = vadd.f32 %v923, %v1632
    %v1634 = vpop.f32.mrf.mxu0
    %v1635 = vadd.f32 %v919, %v1634
    %v1636 = vpop.f32.mrf.mxu0
    %v1637 = vadd.f32 %v923, %v1636
    %1638 = vmatprep.mubr.bf16.mxu0 %v735
    %1639 = vmatmul.mubr.bf16.gmra.mxu0 %v734
    %v1640 = vpop.f32.mrf.mxu0
    %v1641 = vadd.f32 %v919, %v1640
    %v1642 = vpop.f32.mrf.mxu0
    %v1643 = vadd.f32 %v923, %v1642
    %v1644 = vpop.f32.mrf.mxu0
    %v1645 = vadd.f32 %v919, %v1644
    %v1646 = vpop.f32.mrf.mxu0
    %v1647 = vadd.f32 %v923, %v1646
    %1648 = vmatprep.mubr.bf16.mxu0 %v739
    %1649 = vmatmul.mubr.bf16.gmra.mxu0 %v738
    %v1650 = vpop.f32.mrf.mxu0
    %v1651 = vadd.f32 %v919, %v1650
    %v1652 = vpop.f32.mrf.mxu0
    %v1653 = vadd.f32 %v923, %v1652
    %v1654 = vpop.f32.mrf.mxu0
    %v1655 = vadd.f32 %v919, %v1654
    %v1656 = vpop.f32.mrf.mxu0
    %v1657 = vadd.f32 %v923, %v1656
    %1658 = vmatprep.mubr.bf16.mxu0 %v743
    %1659 = vmatmul.mubr.bf16.gmra.mxu0 %v742
    %v1660 = vpop.f32.mrf.mxu0
    %v1661 = vadd.f32 %v919, %v1660
    %v1662 = vpop.f32.mrf.mxu0
    %v1663 = vadd.f32 %v923, %v1662
    %v1664 = vpop.f32.mrf.mxu0
    %v1665 = vadd.f32 %v919, %v1664
    %v1666 = vpop.f32.mrf.mxu0
    %v1667 = vadd.f32 %v923, %v1666
    %1668 = vmatprep.mubr.bf16.mxu0 %v747
    %1669 = vmatmul.mubr.bf16.gmra.mxu0 %v746
    %v1670 = vpop.f32.mrf.mxu0
    %v1671 = vadd.f32 %v919, %v1670
    %v1672 = vpop.f32.mrf.mxu0
    %v1673 = vadd.f32 %v923, %v1672
    %v1674 = vpop.f32.mrf.mxu0
    %v1675 = vadd.f32 %v919, %v1674
    %v1676 = vpop.f32.mrf.mxu0
    %v1677 = vadd.f32 %v923, %v1676
    %1678 = vmatprep.mubr.bf16.mxu0 %v751
    %1679 = vmatmul.mubr.bf16.gmra.mxu0 %v750
    %v1680 = vpop.f32.mrf.mxu0
    %v1681 = vadd.f32 %v919, %v1680
    %v1682 = vpop.f32.mrf.mxu0
    %v1683 = vadd.f32 %v923, %v1682
    %v1684 = vpop.f32.mrf.mxu0
    %v1685 = vadd.f32 %v919, %v1684
    %v1686 = vpop.f32.mrf.mxu0
    %v1687 = vadd.f32 %v923, %v1686
    %1688 = vmatprep.mubr.bf16.mxu0 %v755
    %1689 = vmatmul.mubr.bf16.gmra.mxu0 %v754
    %v1690 = vpop.f32.mrf.mxu0
    %v1691 = vadd.f32 %v919, %v1690
    %v1692 = vpop.f32.mrf.mxu0
    %v1693 = vadd.f32 %v923, %v1692
    %v1694 = vpop.f32.mrf.mxu0
    %v1695 = vadd.f32 %v919, %v1694
    %v1696 = vpop.f32.mrf.mxu0
    %v1697 = vadd.f32 %v923, %v1696
    %1698 = vmatprep.mubr.bf16.mxu0 %v759
    %1699 = vmatmul.mubr.bf16.gmra.mxu0 %v758
    %v1700 = vpop.f32.mrf.mxu0
    %v1701 = vadd.f32 %v919, %v1700
    %v1702 = vpop.f32.mrf.mxu0
    %v1703 = vadd.f32 %v923, %v1702
    %v1704 = vpop.f32.mrf.mxu0
    %v1705 = vadd.f32 %v919, %v1704
    %v1706 = vpop.f32.mrf.mxu0
    %v1707 = vadd.f32 %v923, %v1706
    %1708 = vmatprep.mubr.bf16.mxu0 %v763
    %1709 = vmatmul.mubr.bf16.gmra.mxu0 %v762
    %v1710 = vpop.f32.mrf.mxu0
    %v1711 = vadd.f32 %v919, %v1710
    %v1712 = vpop.f32.mrf.mxu0
    %v1713 = vadd.f32 %v923, %v1712
    %v1714 = vpop.f32.mrf.mxu0
    %v1715 = vadd.f32 %v919, %v1714
    %v1716 = vpop.f32.mrf.mxu0
    %v1717 = vadd.f32 %v923, %v1716
    %1718 = vmatprep.mubr.bf16.mxu0 %v767
    %1719 = vmatmul.mubr.bf16.gmra.mxu0 %v766
    %v1720 = vpop.f32.mrf.mxu0
    %v1721 = vadd.f32 %v919, %v1720
    %v1722 = vpop.f32.mrf.mxu0
    %v1723 = vadd.f32 %v923, %v1722
    %v1724 = vpop.f32.mrf.mxu0
    %v1725 = vadd.f32 %v919, %v1724
    %v1726 = vpop.f32.mrf.mxu0
    %v1727 = vadd.f32 %v923, %v1726
    %1728 = vmatprep.mubr.bf16.mxu0 %v771
    %1729 = vmatmul.mubr.bf16.gmra.mxu0 %v770
    %v1730 = vpop.f32.mrf.mxu0
    %v1731 = vadd.f32 %v919, %v1730
    %v1732 = vpop.f32.mrf.mxu0
    %v1733 = vadd.f32 %v923, %v1732
    %v1734 = vpop.f32.mrf.mxu0
    %v1735 = vadd.f32 %v919, %v1734
    %v1736 = vpop.f32.mrf.mxu0
    %v1737 = vadd.f32 %v923, %v1736
    %1738 = vmatprep.mubr.bf16.mxu0 %v775
    %1739 = vmatmul.mubr.bf16.gmra.mxu0 %v774
    %v1740 = vpop.f32.mrf.mxu0
    %v1741 = vadd.f32 %v919, %v1740
    %v1742 = vpop.f32.mrf.mxu0
    %v1743 = vadd.f32 %v923, %v1742
    %v1744 = vpop.f32.mrf.mxu0
    %v1745 = vadd.f32 %v919, %v1744
    %v1746 = vpop.f32.mrf.mxu0
    %v1747 = vadd.f32 %v923, %v1746
    %1748 = vmatprep.mubr.bf16.mxu0 %v779
    %1749 = vmatmul.mubr.bf16.gmra.mxu0 %v778
    %v1750 = vpop.f32.mrf.mxu0
    %v1751 = vadd.f32 %v919, %v1750
    %v1752 = vpop.f32.mrf.mxu0
    %v1753 = vadd.f32 %v923, %v1752
    %v1754 = vpop.f32.mrf.mxu0
    %v1755 = vadd.f32 %v919, %v1754
    %v1756 = vpop.f32.mrf.mxu0
    %v1757 = vadd.f32 %v923, %v1756
    %1758 = vmatprep.mubr.bf16.mxu0 %v783
    %1759 = vmatmul.mubr.bf16.gmra.mxu0 %v782
    %v1760 = vpop.f32.mrf.mxu0
    %v1761 = vadd.f32 %v919, %v1760
    %v1762 = vpop.f32.mrf.mxu0
    %v1763 = vadd.f32 %v923, %v1762
    %v1764 = vpop.f32.mrf.mxu0
    %v1765 = vadd.f32 %v919, %v1764
    %v1766 = vpop.f32.mrf.mxu0
    %v1767 = vadd.f32 %v923, %v1766
    %1768 = vdwg.mxu0
    %1769 = vmatprep.subr.bf16.mxu0 %v1413
    %1770 = vmatpush1.bf16.msra.mxu0 %v1412
    %1771 = vmatprep.subr.bf16.mxu0 %v1409
    %1772 = vmatpush1.bf16.msra.mxu0 %v1408
    %1773 = vmatprep.subr.bf16.mxu0 %v1405
    %1774 = vmatpush1.bf16.msra.mxu0 %v1404
    %1775 = vmatprep.subr.bf16.mxu0 %v1401
    %1776 = vmatpush1.bf16.msra.mxu0 %v1400
    %1777 = vmatprep.subr.bf16.mxu0 %v1397
    %1778 = vmatpush1.bf16.msra.mxu0 %v1396
    %1779 = vmatprep.subr.bf16.mxu0 %v1393
    %1780 = vmatpush1.bf16.msra.mxu0 %v1392
    %1781 = vmatprep.subr.bf16.mxu0 %v1389
    %1782 = vmatpush1.bf16.msra.mxu0 %v1388
    %1783 = vmatprep.subr.bf16.mxu0 %v1385
    %1784 = vmatpush1.bf16.msra.mxu0 %v1384
    %1785 = vmatprep.subr.bf16.mxu0 %v1445
    %1786 = vmatpush2.bf16.msra.mxu0 %v1444
    %1787 = vmatprep.subr.bf16.mxu0 %v1441
    %1788 = vmatpush2.bf16.msra.mxu0 %v1440
    %1789 = vmatprep.subr.bf16.mxu0 %v1437
    %1790 = vmatpush2.bf16.msra.mxu0 %v1436
    %1791 = vmatprep.subr.bf16.mxu0 %v1433
    %1792 = vmatpush2.bf16.msra.mxu0 %v1432
    %1793 = vmatprep.subr.bf16.mxu0 %v1429
    %1794 = vmatpush2.bf16.msra.mxu0 %v1428
    %1795 = vmatprep.subr.bf16.mxu0 %v1425
    %1796 = vmatpush2.bf16.msra.mxu0 %v1424
    %1797 = vmatprep.subr.bf16.mxu0 %v1421
    %1798 = vmatpush2.bf16.msra.mxu0 %v1420
    %1799 = vmatprep.subr.bf16.mxu0 %v1417
    %1800 = vmatpush2.bf16.msra.mxu0 %v1416
    %1801 = vmatprep.mubr.bf16.mxu0 %v725
    %1802 = vmatmul.mubr.bf16.gmra.mxu0 %v724
    %v1803 = vpop.f32.mrf.mxu0
    %v1804 = vadd.f32 %v1611, %v1803
    %v1805 = vpop.f32.mrf.mxu0
    %v1806 = vadd.f32 %v1613, %v1805
    %v1807 = vpop.f32.mrf.mxu0
    %v1808 = vadd.f32 %v1615, %v1807
    %v1809 = vpop.f32.mrf.mxu0
    %v1810 = vadd.f32 %v1617, %v1809
    %1811 = vmatprep.mubr.bf16.mxu0 %v729
    %1812 = vmatmul.mubr.bf16.gmra.mxu0 %v728
    %v1813 = vpop.f32.mrf.mxu0
    %v1814 = vadd.f32 %v1621, %v1813
    %v1815 = vpop.f32.mrf.mxu0
    %v1816 = vadd.f32 %v1623, %v1815
    %v1817 = vpop.f32.mrf.mxu0
    %v1818 = vadd.f32 %v1625, %v1817
    %v1819 = vpop.f32.mrf.mxu0
    %v1820 = vadd.f32 %v1627, %v1819
    %1821 = vmatprep.mubr.bf16.mxu0 %v733
    %1822 = vmatmul.mubr.bf16.gmra.mxu0 %v732
    %v1823 = vpop.f32.mrf.mxu0
    %v1824 = vadd.f32 %v1631, %v1823
    %v1825 = vpop.f32.mrf.mxu0
    %v1826 = vadd.f32 %v1633, %v1825
    %v1827 = vpop.f32.mrf.mxu0
    %v1828 = vadd.f32 %v1635, %v1827
    %v1829 = vpop.f32.mrf.mxu0
    %v1830 = vadd.f32 %v1637, %v1829
    %1831 = vmatprep.mubr.bf16.mxu0 %v737
    %1832 = vmatmul.mubr.bf16.gmra.mxu0 %v736
    %v1833 = vpop.f32.mrf.mxu0
    %v1834 = vadd.f32 %v1641, %v1833
    %v1835 = vpop.f32.mrf.mxu0
    %v1836 = vadd.f32 %v1643, %v1835
    %v1837 = vpop.f32.mrf.mxu0
    %v1838 = vadd.f32 %v1645, %v1837
    %v1839 = vpop.f32.mrf.mxu0
    %v1840 = vadd.f32 %v1647, %v1839
    %1841 = vmatprep.mubr.bf16.mxu0 %v741
    %1842 = vmatmul.mubr.bf16.gmra.mxu0 %v740
    %v1843 = vpop.f32.mrf.mxu0
    %v1844 = vadd.f32 %v1651, %v1843
    %v1845 = vpop.f32.mrf.mxu0
    %v1846 = vadd.f32 %v1653, %v1845
    %v1847 = vpop.f32.mrf.mxu0
    %v1848 = vadd.f32 %v1655, %v1847
    %v1849 = vpop.f32.mrf.mxu0
    %v1850 = vadd.f32 %v1657, %v1849
    %1851 = vmatprep.mubr.bf16.mxu0 %v745
    %1852 = vmatmul.mubr.bf16.gmra.mxu0 %v744
    %v1853 = vpop.f32.mrf.mxu0
    %v1854 = vadd.f32 %v1661, %v1853
    %v1855 = vpop.f32.mrf.mxu0
    %v1856 = vadd.f32 %v1663, %v1855
    %v1857 = vpop.f32.mrf.mxu0
    %v1858 = vadd.f32 %v1665, %v1857
    %v1859 = vpop.f32.mrf.mxu0
    %v1860 = vadd.f32 %v1667, %v1859
    %1861 = vmatprep.mubr.bf16.mxu0 %v749
    %1862 = vmatmul.mubr.bf16.gmra.mxu0 %v748
    %v1863 = vpop.f32.mrf.mxu0
    %v1864 = vadd.f32 %v1671, %v1863
    %v1865 = vpop.f32.mrf.mxu0
    %v1866 = vadd.f32 %v1673, %v1865
    %v1867 = vpop.f32.mrf.mxu0
    %v1868 = vadd.f32 %v1675, %v1867
    %v1869 = vpop.f32.mrf.mxu0
    %v1870 = vadd.f32 %v1677, %v1869
    %1871 = vmatprep.mubr.bf16.mxu0 %v753
    %1872 = vmatmul.mubr.bf16.gmra.mxu0 %v752
    %v1873 = vpop.f32.mrf.mxu0
    %v1874 = vadd.f32 %v1681, %v1873
    %v1875 = vpop.f32.mrf.mxu0
    %v1876 = vadd.f32 %v1683, %v1875
    %v1877 = vpop.f32.mrf.mxu0
    %v1878 = vadd.f32 %v1685, %v1877
    %v1879 = vpop.f32.mrf.mxu0
    %v1880 = vadd.f32 %v1687, %v1879
    %1881 = vmatprep.mubr.bf16.mxu0 %v757
    %1882 = vmatmul.mubr.bf16.gmra.mxu0 %v756
    %v1883 = vpop.f32.mrf.mxu0
    %v1884 = vadd.f32 %v1691, %v1883
    %v1885 = vpop.f32.mrf.mxu0
    %v1886 = vadd.f32 %v1693, %v1885
    %v1887 = vpop.f32.mrf.mxu0
    %v1888 = vadd.f32 %v1695, %v1887
    %v1889 = vpop.f32.mrf.mxu0
    %v1890 = vadd.f32 %v1697, %v1889
    %1891 = vmatprep.mubr.bf16.mxu0 %v761
    %1892 = vmatmul.mubr.bf16.gmra.mxu0 %v760
    %v1893 = vpop.f32.mrf.mxu0
    %v1894 = vadd.f32 %v1701, %v1893
    %v1895 = vpop.f32.mrf.mxu0
    %v1896 = vadd.f32 %v1703, %v1895
    %v1897 = vpop.f32.mrf.mxu0
    %v1898 = vadd.f32 %v1705, %v1897
    %v1899 = vpop.f32.mrf.mxu0
    %v1900 = vadd.f32 %v1707, %v1899
    %1901 = vmatprep.mubr.bf16.mxu0 %v765
    %1902 = vmatmul.mubr.bf16.gmra.mxu0 %v764
    %v1903 = vpop.f32.mrf.mxu0
    %v1904 = vadd.f32 %v1711, %v1903
    %v1905 = vpop.f32.mrf.mxu0
    %v1906 = vadd.f32 %v1713, %v1905
    %v1907 = vpop.f32.mrf.mxu0
    %v1908 = vadd.f32 %v1715, %v1907
    %v1909 = vpop.f32.mrf.mxu0
    %v1910 = vadd.f32 %v1717, %v1909
    %1911 = vmatprep.mubr.bf16.mxu0 %v769
    %1912 = vmatmul.mubr.bf16.gmra.mxu0 %v768
    %v1913 = vpop.f32.mrf.mxu0
    %v1914 = vadd.f32 %v1721, %v1913
    %v1915 = vpop.f32.mrf.mxu0
    %v1916 = vadd.f32 %v1723, %v1915
    %v1917 = vpop.f32.mrf.mxu0
    %v1918 = vadd.f32 %v1725, %v1917
    %v1919 = vpop.f32.mrf.mxu0
    %v1920 = vadd.f32 %v1727, %v1919
    %1921 = vmatprep.mubr.bf16.mxu0 %v773
    %1922 = vmatmul.mubr.bf16.gmra.mxu0 %v772
    %v1923 = vpop.f32.mrf.mxu0
    %v1924 = vadd.f32 %v1731, %v1923
    %v1925 = vpop.f32.mrf.mxu0
    %v1926 = vadd.f32 %v1733, %v1925
    %v1927 = vpop.f32.mrf.mxu0
    %v1928 = vadd.f32 %v1735, %v1927
    %v1929 = vpop.f32.mrf.mxu0
    %v1930 = vadd.f32 %v1737, %v1929
    %1931 = vmatprep.mubr.bf16.mxu0 %v777
    %1932 = vmatmul.mubr.bf16.gmra.mxu0 %v776
    %v1933 = vpop.f32.mrf.mxu0
    %v1934 = vadd.f32 %v1741, %v1933
    %v1935 = vpop.f32.mrf.mxu0
    %v1936 = vadd.f32 %v1743, %v1935
    %v1937 = vpop.f32.mrf.mxu0
    %v1938 = vadd.f32 %v1745, %v1937
    %v1939 = vpop.f32.mrf.mxu0
    %v1940 = vadd.f32 %v1747, %v1939
    %1941 = vmatprep.mubr.bf16.mxu0 %v781
    %1942 = vmatmul.mubr.bf16.gmra.mxu0 %v780
    %v1943 = vpop.f32.mrf.mxu0
    %v1944 = vadd.f32 %v1751, %v1943
    %v1945 = vpop.f32.mrf.mxu0
    %v1946 = vadd.f32 %v1753, %v1945
    %v1947 = vpop.f32.mrf.mxu0
    %v1948 = vadd.f32 %v1755, %v1947
    %v1949 = vpop.f32.mrf.mxu0
    %v1950 = vadd.f32 %v1757, %v1949
    %1951 = vmatprep.mubr.bf16.mxu0 %v785
    %1952 = vmatmul.mubr.bf16.gmra.mxu0 %v784
    %v1953 = vpop.f32.mrf.mxu0
    %v1954 = vadd.f32 %v1761, %v1953
    %v1955 = vpop.f32.mrf.mxu0
    %v1956 = vadd.f32 %v1763, %v1955
    %v1957 = vpop.f32.mrf.mxu0
    %v1958 = vadd.f32 %v1765, %v1957
    %v1959 = vpop.f32.mrf.mxu0
    %v1960 = vadd.f32 %v1767, %v1959
    %1961 = vdwg.mxu0
    %1962 = vmatprep.subr.bf16.mxu0 %v1351
    %1963 = vmatpush1.bf16.msra.mxu0 %v1350
    %1964 = vmatprep.subr.bf16.mxu0 %v1347
    %1965 = vmatpush1.bf16.msra.mxu0 %v1346
    %1966 = vmatprep.subr.bf16.mxu0 %v1343
    %1967 = vmatpush1.bf16.msra.mxu0 %v1342
    %1968 = vmatprep.subr.bf16.mxu0 %v1339
    %1969 = vmatpush1.bf16.msra.mxu0 %v1338
    %1970 = vmatprep.subr.bf16.mxu0 %v1335
    %1971 = vmatpush1.bf16.msra.mxu0 %v1334
    %1972 = vmatprep.subr.bf16.mxu0 %v1331
    %1973 = vmatpush1.bf16.msra.mxu0 %v1330
    %1974 = vmatprep.subr.bf16.mxu0 %v1327
    %1975 = vmatpush1.bf16.msra.mxu0 %v1326
    %1976 = vmatprep.subr.bf16.mxu0 %v1323
    %1977 = vmatpush1.bf16.msra.mxu0 %v1322
    %1978 = vmatprep.subr.bf16.mxu0 %v1383
    %1979 = vmatpush2.bf16.msra.mxu0 %v1382
    %1980 = vmatprep.subr.bf16.mxu0 %v1379
    %1981 = vmatpush2.bf16.msra.mxu0 %v1378
    %1982 = vmatprep.subr.bf16.mxu0 %v1375
    %1983 = vmatpush2.bf16.msra.mxu0 %v1374
    %1984 = vmatprep.subr.bf16.mxu0 %v1371
    %1985 = vmatpush2.bf16.msra.mxu0 %v1370
    %1986 = vmatprep.subr.bf16.mxu0 %v1367
    %1987 = vmatpush2.bf16.msra.mxu0 %v1366
    %1988 = vmatprep.subr.bf16.mxu0 %v1363
    %1989 = vmatpush2.bf16.msra.mxu0 %v1362
    %1990 = vmatprep.subr.bf16.mxu0 %v1359
    %1991 = vmatpush2.bf16.msra.mxu0 %v1358
    %1992 = vmatprep.subr.bf16.mxu0 %v1355
    %1993 = vmatpush2.bf16.msra.mxu0 %v1354
    %1994 = vmatprep.mubr.bf16.mxu0 %v723
    %1995 = vmatmul.mubr.bf16.gmra.mxu0 %v722
    %v1996 = vpop.f32.mrf.mxu0
    %v1997 = vadd.f32 %v927, %v1996
    %v1998 = vpop.f32.mrf.mxu0
    %v1999 = vadd.f32 %v931, %v1998
    %v2000 = vpop.f32.mrf.mxu0
    %v2001 = vadd.f32 %v927, %v2000
    %v2002 = vpop.f32.mrf.mxu0
    %v2003 = vadd.f32 %v931, %v2002
    %2004 = vmatprep.mubr.bf16.mxu0 %v727
    %2005 = vmatmul.mubr.bf16.gmra.mxu0 %v726
    %v2006 = vpop.f32.mrf.mxu0
    %v2007 = vadd.f32 %v927, %v2006
    %v2008 = vpop.f32.mrf.mxu0
    %v2009 = vadd.f32 %v931, %v2008
    %v2010 = vpop.f32.mrf.mxu0
    %v2011 = vadd.f32 %v927, %v2010
    %v2012 = vpop.f32.mrf.mxu0
    %v2013 = vadd.f32 %v931, %v2012
    %2014 = vmatprep.mubr.bf16.mxu0 %v731
    %2015 = vmatmul.mubr.bf16.gmra.mxu0 %v730
    %v2016 = vpop.f32.mrf.mxu0
    %v2017 = vadd.f32 %v927, %v2016
    %v2018 = vpop.f32.mrf.mxu0
    %v2019 = vadd.f32 %v931, %v2018
    %v2020 = vpop.f32.mrf.mxu0
    %v2021 = vadd.f32 %v927, %v2020
    %v2022 = vpop.f32.mrf.mxu0
    %v2023 = vadd.f32 %v931, %v2022
    %2024 = vmatprep.mubr.bf16.mxu0 %v735
    %2025 = vmatmul.mubr.bf16.gmra.mxu0 %v734
    %v2026 = vpop.f32.mrf.mxu0
    %v2027 = vadd.f32 %v927, %v2026
    %v2028 = vpop.f32.mrf.mxu0
    %v2029 = vadd.f32 %v931, %v2028
    %v2030 = vpop.f32.mrf.mxu0
    %v2031 = vadd.f32 %v927, %v2030
    %v2032 = vpop.f32.mrf.mxu0
    %v2033 = vadd.f32 %v931, %v2032
    %2034 = vmatprep.mubr.bf16.mxu0 %v739
    %2035 = vmatmul.mubr.bf16.gmra.mxu0 %v738
    %v2036 = vpop.f32.mrf.mxu0
    %v2037 = vadd.f32 %v927, %v2036
    %v2038 = vpop.f32.mrf.mxu0
    %v2039 = vadd.f32 %v931, %v2038
    %v2040 = vpop.f32.mrf.mxu0
    %v2041 = vadd.f32 %v927, %v2040
    %v2042 = vpop.f32.mrf.mxu0
    %v2043 = vadd.f32 %v931, %v2042
    %2044 = vmatprep.mubr.bf16.mxu0 %v743
    %2045 = vmatmul.mubr.bf16.gmra.mxu0 %v742
    %v2046 = vpop.f32.mrf.mxu0
    %v2047 = vadd.f32 %v927, %v2046
    %v2048 = vpop.f32.mrf.mxu0
    %v2049 = vadd.f32 %v931, %v2048
    %v2050 = vpop.f32.mrf.mxu0
    %v2051 = vadd.f32 %v927, %v2050
    %v2052 = vpop.f32.mrf.mxu0
    %v2053 = vadd.f32 %v931, %v2052
    %2054 = vmatprep.mubr.bf16.mxu0 %v747
    %2055 = vmatmul.mubr.bf16.gmra.mxu0 %v746
    %v2056 = vpop.f32.mrf.mxu0
    %v2057 = vadd.f32 %v927, %v2056
    %v2058 = vpop.f32.mrf.mxu0
    %v2059 = vadd.f32 %v931, %v2058
    %v2060 = vpop.f32.mrf.mxu0
    %v2061 = vadd.f32 %v927, %v2060
    %v2062 = vpop.f32.mrf.mxu0
    %v2063 = vadd.f32 %v931, %v2062
    %2064 = vmatprep.mubr.bf16.mxu0 %v751
    %2065 = vmatmul.mubr.bf16.gmra.mxu0 %v750
    %v2066 = vpop.f32.mrf.mxu0
    %v2067 = vadd.f32 %v927, %v2066
    %v2068 = vpop.f32.mrf.mxu0
    %v2069 = vadd.f32 %v931, %v2068
    %v2070 = vpop.f32.mrf.mxu0
    %v2071 = vadd.f32 %v927, %v2070
    %v2072 = vpop.f32.mrf.mxu0
    %v2073 = vadd.f32 %v931, %v2072
    %2074 = vmatprep.mubr.bf16.mxu0 %v755
    %2075 = vmatmul.mubr.bf16.gmra.mxu0 %v754
    %v2076 = vpop.f32.mrf.mxu0
    %v2077 = vadd.f32 %v927, %v2076
    %v2078 = vpop.f32.mrf.mxu0
    %v2079 = vadd.f32 %v931, %v2078
    %v2080 = vpop.f32.mrf.mxu0
    %v2081 = vadd.f32 %v927, %v2080
    %v2082 = vpop.f32.mrf.mxu0
    %v2083 = vadd.f32 %v931, %v2082
    %2084 = vmatprep.mubr.bf16.mxu0 %v759
    %2085 = vmatmul.mubr.bf16.gmra.mxu0 %v758
    %v2086 = vpop.f32.mrf.mxu0
    %v2087 = vadd.f32 %v927, %v2086
    %v2088 = vpop.f32.mrf.mxu0
    %v2089 = vadd.f32 %v931, %v2088
    %v2090 = vpop.f32.mrf.mxu0
    %v2091 = vadd.f32 %v927, %v2090
    %v2092 = vpop.f32.mrf.mxu0
    %v2093 = vadd.f32 %v931, %v2092
    %2094 = vmatprep.mubr.bf16.mxu0 %v763
    %2095 = vmatmul.mubr.bf16.gmra.mxu0 %v762
    %v2096 = vpop.f32.mrf.mxu0
    %v2097 = vadd.f32 %v927, %v2096
    %v2098 = vpop.f32.mrf.mxu0
    %v2099 = vadd.f32 %v931, %v2098
    %v2100 = vpop.f32.mrf.mxu0
    %v2101 = vadd.f32 %v927, %v2100
    %v2102 = vpop.f32.mrf.mxu0
    %v2103 = vadd.f32 %v931, %v2102
    %2104 = vmatprep.mubr.bf16.mxu0 %v767
    %2105 = vmatmul.mubr.bf16.gmra.mxu0 %v766
    %v2106 = vpop.f32.mrf.mxu0
    %v2107 = vadd.f32 %v927, %v2106
    %v2108 = vpop.f32.mrf.mxu0
    %v2109 = vadd.f32 %v931, %v2108
    %v2110 = vpop.f32.mrf.mxu0
    %v2111 = vadd.f32 %v927, %v2110
    %v2112 = vpop.f32.mrf.mxu0
    %v2113 = vadd.f32 %v931, %v2112
    %2114 = vmatprep.mubr.bf16.mxu0 %v771
    %2115 = vmatmul.mubr.bf16.gmra.mxu0 %v770
    %v2116 = vpop.f32.mrf.mxu0
    %v2117 = vadd.f32 %v927, %v2116
    %v2118 = vpop.f32.mrf.mxu0
    %v2119 = vadd.f32 %v931, %v2118
    %v2120 = vpop.f32.mrf.mxu0
    %v2121 = vadd.f32 %v927, %v2120
    %v2122 = vpop.f32.mrf.mxu0
    %v2123 = vadd.f32 %v931, %v2122
    %2124 = vmatprep.mubr.bf16.mxu0 %v775
    %2125 = vmatmul.mubr.bf16.gmra.mxu0 %v774
    %v2126 = vpop.f32.mrf.mxu0
    %v2127 = vadd.f32 %v927, %v2126
    %v2128 = vpop.f32.mrf.mxu0
    %v2129 = vadd.f32 %v931, %v2128
    %v2130 = vpop.f32.mrf.mxu0
    %v2131 = vadd.f32 %v927, %v2130
    %v2132 = vpop.f32.mrf.mxu0
    %v2133 = vadd.f32 %v931, %v2132
    %2134 = vmatprep.mubr.bf16.mxu0 %v779
    %2135 = vmatmul.mubr.bf16.gmra.mxu0 %v778
    %v2136 = vpop.f32.mrf.mxu0
    %v2137 = vadd.f32 %v927, %v2136
    %v2138 = vpop.f32.mrf.mxu0
    %v2139 = vadd.f32 %v931, %v2138
    %v2140 = vpop.f32.mrf.mxu0
    %v2141 = vadd.f32 %v927, %v2140
    %v2142 = vpop.f32.mrf.mxu0
    %v2143 = vadd.f32 %v931, %v2142
    %2144 = vmatprep.mubr.bf16.mxu0 %v783
    %2145 = vmatmul.mubr.bf16.gmra.mxu0 %v782
    %v2146 = vpop.f32.mrf.mxu0
    %v2147 = vadd.f32 %v927, %v2146
    %v2148 = vpop.f32.mrf.mxu0
    %v2149 = vadd.f32 %v931, %v2148
    %v2150 = vpop.f32.mrf.mxu0
    %v2151 = vadd.f32 %v927, %v2150
    %v2152 = vpop.f32.mrf.mxu0
    %v2153 = vadd.f32 %v931, %v2152
    %2154 = vdwg.mxu0
    %2155 = vmatprep.subr.bf16.mxu0 %v1415
    %2156 = vmatpush1.bf16.msra.mxu0 %v1414
    %2157 = vmatprep.subr.bf16.mxu0 %v1411
    %2158 = vmatpush1.bf16.msra.mxu0 %v1410
    %2159 = vmatprep.subr.bf16.mxu0 %v1407
    %2160 = vmatpush1.bf16.msra.mxu0 %v1406
    %2161 = vmatprep.subr.bf16.mxu0 %v1403
    %2162 = vmatpush1.bf16.msra.mxu0 %v1402
    %2163 = vmatprep.subr.bf16.mxu0 %v1399
    %2164 = vmatpush1.bf16.msra.mxu0 %v1398
    %2165 = vmatprep.subr.bf16.mxu0 %v1395
    %2166 = vmatpush1.bf16.msra.mxu0 %v1394
    %2167 = vmatprep.subr.bf16.mxu0 %v1391
    %2168 = vmatpush1.bf16.msra.mxu0 %v1390
    %2169 = vmatprep.subr.bf16.mxu0 %v1387
    %2170 = vmatpush1.bf16.msra.mxu0 %v1386
    %2171 = vmatprep.subr.bf16.mxu0 %v1447
    %2172 = vmatpush2.bf16.msra.mxu0 %v1446
    %2173 = vmatprep.subr.bf16.mxu0 %v1443
    %2174 = vmatpush2.bf16.msra.mxu0 %v1442
    %2175 = vmatprep.subr.bf16.mxu0 %v1439
    %2176 = vmatpush2.bf16.msra.mxu0 %v1438
    %2177 = vmatprep.subr.bf16.mxu0 %v1435
    %2178 = vmatpush2.bf16.msra.mxu0 %v1434
    %2179 = vmatprep.subr.bf16.mxu0 %v1431
    %2180 = vmatpush2.bf16.msra.mxu0 %v1430
    %2181 = vmatprep.subr.bf16.mxu0 %v1427
    %2182 = vmatpush2.bf16.msra.mxu0 %v1426
    %2183 = vmatprep.subr.bf16.mxu0 %v1423
    %2184 = vmatpush2.bf16.msra.mxu0 %v1422
    %2185 = vmatprep.subr.bf16.mxu0 %v1419
    %2186 = vmatpush2.bf16.msra.mxu0 %v1418
    %2187 = vmatprep.mubr.bf16.mxu0 %v725
    %2188 = vmatmul.mubr.bf16.gmra.mxu0 %v724
    %v2189 = vpop.f32.mrf.mxu0
    %v2190 = vadd.f32 %v1997, %v2189
    %v2191 = vpop.f32.mrf.mxu0
    %v2192 = vadd.f32 %v1999, %v2191
    %v2193 = vpop.f32.mrf.mxu0
    %v2194 = vadd.f32 %v2001, %v2193
    %v2195 = vpop.f32.mrf.mxu0
    %v2196 = vadd.f32 %v2003, %v2195
    %2197 = vmatprep.mubr.bf16.mxu0 %v729
    %2198 = vmatmul.mubr.bf16.gmra.mxu0 %v728
    %v2199 = vpop.f32.mrf.mxu0
    %v2200 = vadd.f32 %v2007, %v2199
    %v2201 = vpop.f32.mrf.mxu0
    %v2202 = vadd.f32 %v2009, %v2201
    %v2203 = vpop.f32.mrf.mxu0
    %v2204 = vadd.f32 %v2011, %v2203
    %v2205 = vpop.f32.mrf.mxu0
    %v2206 = vadd.f32 %v2013, %v2205
    %2207 = vmatprep.mubr.bf16.mxu0 %v733
    %2208 = vmatmul.mubr.bf16.gmra.mxu0 %v732
    %v2209 = vpop.f32.mrf.mxu0
    %v2210 = vadd.f32 %v2017, %v2209
    %v2211 = vpop.f32.mrf.mxu0
    %v2212 = vadd.f32 %v2019, %v2211
    %v2213 = vpop.f32.mrf.mxu0
    %v2214 = vadd.f32 %v2021, %v2213
    %v2215 = vpop.f32.mrf.mxu0
    %v2216 = vadd.f32 %v2023, %v2215
    %2217 = vmatprep.mubr.bf16.mxu0 %v737
    %2218 = vmatmul.mubr.bf16.gmra.mxu0 %v736
    %v2219 = vpop.f32.mrf.mxu0
    %v2220 = vadd.f32 %v2027, %v2219
    %v2221 = vpop.f32.mrf.mxu0
    %v2222 = vadd.f32 %v2029, %v2221
    %v2223 = vpop.f32.mrf.mxu0
    %v2224 = vadd.f32 %v2031, %v2223
    %v2225 = vpop.f32.mrf.mxu0
    %v2226 = vadd.f32 %v2033, %v2225
    %2227 = vmatprep.mubr.bf16.mxu0 %v741
    %2228 = vmatmul.mubr.bf16.gmra.mxu0 %v740
    %v2229 = vpop.f32.mrf.mxu0
    %v2230 = vadd.f32 %v2037, %v2229
    %v2231 = vpop.f32.mrf.mxu0
    %v2232 = vadd.f32 %v2039, %v2231
    %v2233 = vpop.f32.mrf.mxu0
    %v2234 = vadd.f32 %v2041, %v2233
    %v2235 = vpop.f32.mrf.mxu0
    %v2236 = vadd.f32 %v2043, %v2235
    %2237 = vmatprep.mubr.bf16.mxu0 %v745
    %2238 = vmatmul.mubr.bf16.gmra.mxu0 %v744
    %v2239 = vpop.f32.mrf.mxu0
    %v2240 = vadd.f32 %v2047, %v2239
    %v2241 = vpop.f32.mrf.mxu0
    %v2242 = vadd.f32 %v2049, %v2241
    %v2243 = vpop.f32.mrf.mxu0
    %v2244 = vadd.f32 %v2051, %v2243
    %v2245 = vpop.f32.mrf.mxu0
    %v2246 = vadd.f32 %v2053, %v2245
    %2247 = vmatprep.mubr.bf16.mxu0 %v749
    %2248 = vmatmul.mubr.bf16.gmra.mxu0 %v748
    %v2249 = vpop.f32.mrf.mxu0
    %v2250 = vadd.f32 %v2057, %v2249
    %v2251 = vpop.f32.mrf.mxu0
    %v2252 = vadd.f32 %v2059, %v2251
    %v2253 = vpop.f32.mrf.mxu0
    %v2254 = vadd.f32 %v2061, %v2253
    %v2255 = vpop.f32.mrf.mxu0
    %v2256 = vadd.f32 %v2063, %v2255
    %2257 = vmatprep.mubr.bf16.mxu0 %v753
    %2258 = vmatmul.mubr.bf16.gmra.mxu0 %v752
    %v2259 = vpop.f32.mrf.mxu0
    %v2260 = vadd.f32 %v2067, %v2259
    %v2261 = vpop.f32.mrf.mxu0
    %v2262 = vadd.f32 %v2069, %v2261
    %v2263 = vpop.f32.mrf.mxu0
    %v2264 = vadd.f32 %v2071, %v2263
    %v2265 = vpop.f32.mrf.mxu0
    %v2266 = vadd.f32 %v2073, %v2265
    %2267 = vmatprep.mubr.bf16.mxu0 %v757
    %2268 = vmatmul.mubr.bf16.gmra.mxu0 %v756
    %v2269 = vpop.f32.mrf.mxu0
    %v2270 = vadd.f32 %v2077, %v2269
    %v2271 = vpop.f32.mrf.mxu0
    %v2272 = vadd.f32 %v2079, %v2271
    %v2273 = vpop.f32.mrf.mxu0
    %v2274 = vadd.f32 %v2081, %v2273
    %v2275 = vpop.f32.mrf.mxu0
    %v2276 = vadd.f32 %v2083, %v2275
    %2277 = vmatprep.mubr.bf16.mxu0 %v761
    %2278 = vmatmul.mubr.bf16.gmra.mxu0 %v760
    %v2279 = vpop.f32.mrf.mxu0
    %v2280 = vadd.f32 %v2087, %v2279
    %v2281 = vpop.f32.mrf.mxu0
    %v2282 = vadd.f32 %v2089, %v2281
    %v2283 = vpop.f32.mrf.mxu0
    %v2284 = vadd.f32 %v2091, %v2283
    %v2285 = vpop.f32.mrf.mxu0
    %v2286 = vadd.f32 %v2093, %v2285
    %2287 = vmatprep.mubr.bf16.mxu0 %v765
    %2288 = vmatmul.mubr.bf16.gmra.mxu0 %v764
    %v2289 = vpop.f32.mrf.mxu0
    %v2290 = vadd.f32 %v2097, %v2289
    %v2291 = vpop.f32.mrf.mxu0
    %v2292 = vadd.f32 %v2099, %v2291
    %v2293 = vpop.f32.mrf.mxu0
    %v2294 = vadd.f32 %v2101, %v2293
    %v2295 = vpop.f32.mrf.mxu0
    %v2296 = vadd.f32 %v2103, %v2295
    %2297 = vmatprep.mubr.bf16.mxu0 %v769
    %2298 = vmatmul.mubr.bf16.gmra.mxu0 %v768
    %v2299 = vpop.f32.mrf.mxu0
    %v2300 = vadd.f32 %v2107, %v2299
    %v2301 = vpop.f32.mrf.mxu0
    %v2302 = vadd.f32 %v2109, %v2301
    %v2303 = vpop.f32.mrf.mxu0
    %v2304 = vadd.f32 %v2111, %v2303
    %v2305 = vpop.f32.mrf.mxu0
    %v2306 = vadd.f32 %v2113, %v2305
    %2307 = vmatprep.mubr.bf16.mxu0 %v773
    %2308 = vmatmul.mubr.bf16.gmra.mxu0 %v772
    %v2309 = vpop.f32.mrf.mxu0
    %v2310 = vadd.f32 %v2117, %v2309
    %v2311 = vpop.f32.mrf.mxu0
    %v2312 = vadd.f32 %v2119, %v2311
    %v2313 = vpop.f32.mrf.mxu0
    %v2314 = vadd.f32 %v2121, %v2313
    %v2315 = vpop.f32.mrf.mxu0
    %v2316 = vadd.f32 %v2123, %v2315
    %2317 = vmatprep.mubr.bf16.mxu0 %v777
    %2318 = vmatmul.mubr.bf16.gmra.mxu0 %v776
    %v2319 = vpop.f32.mrf.mxu0
    %v2320 = vadd.f32 %v2127, %v2319
    %v2321 = vpop.f32.mrf.mxu0
    %v2322 = vadd.f32 %v2129, %v2321
    %v2323 = vpop.f32.mrf.mxu0
    %v2324 = vadd.f32 %v2131, %v2323
    %v2325 = vpop.f32.mrf.mxu0
    %v2326 = vadd.f32 %v2133, %v2325
    %2327 = vmatprep.mubr.bf16.mxu0 %v781
    %2328 = vmatmul.mubr.bf16.gmra.mxu0 %v780
    %v2329 = vpop.f32.mrf.mxu0
    %v2330 = vadd.f32 %v2137, %v2329
    %v2331 = vpop.f32.mrf.mxu0
    %v2332 = vadd.f32 %v2139, %v2331
    %v2333 = vpop.f32.mrf.mxu0
    %v2334 = vadd.f32 %v2141, %v2333
    %v2335 = vpop.f32.mrf.mxu0
    %v2336 = vadd.f32 %v2143, %v2335
    %2337 = vmatprep.mubr.bf16.mxu0 %v785
    %2338 = vmatmul.mubr.bf16.gmra.mxu0 %v784
    %v2339 = vpop.f32.mrf.mxu0
    %v2340 = vadd.f32 %v2147, %v2339
    %v2341 = vpop.f32.mrf.mxu0
    %v2342 = vadd.f32 %v2149, %v2341
    %v2343 = vpop.f32.mrf.mxu0
    %v2344 = vadd.f32 %v2151, %v2343
    %v2345 = vpop.f32.mrf.mxu0
    %v2346 = vadd.f32 %v2153, %v2345
    %2347 = vdwg.mxu0
    %v2348 = vmax.f32 %v1804, 0.0
    %v2349 = vmax.f32 %v1806, 0.0
    %v2350 = vmax.f32 %v2190, 0.0
    %v2351 = vmax.f32 %v2192, 0.0
    %v2352 = vmax.f32 %v1808, 0.0
    %v2353 = vmax.f32 %v1810, 0.0
    %v2354 = vmax.f32 %v2194, 0.0
    %v2355 = vmax.f32 %v2196, 0.0
    %v2356 = vmax.f32 %v1814, 0.0
    %v2357 = vmax.f32 %v1816, 0.0
    %v2358 = vmax.f32 %v2200, 0.0
    %v2359 = vmax.f32 %v2202, 0.0
    %v2360 = vmax.f32 %v1818, 0.0
    %v2361 = vmax.f32 %v1820, 0.0
    %v2362 = vmax.f32 %v2204, 0.0
    %v2363 = vmax.f32 %v2206, 0.0
    %v2364 = vmax.f32 %v1824, 0.0
    %v2365 = vmax.f32 %v1826, 0.0
    %v2366 = vmax.f32 %v2210, 0.0
    %v2367 = vmax.f32 %v2212, 0.0
    %v2368 = vmax.f32 %v1828, 0.0
    %v2369 = vmax.f32 %v1830, 0.0
    %v2370 = vmax.f32 %v2214, 0.0
    %v2371 = vmax.f32 %v2216, 0.0
    %v2372 = vmax.f32 %v1834, 0.0
    %v2373 = vmax.f32 %v1836, 0.0
    %v2374 = vmax.f32 %v2220, 0.0
    %v2375 = vmax.f32 %v2222, 0.0
    %v2376 = vmax.f32 %v1838, 0.0
    %v2377 = vmax.f32 %v1840, 0.0
    %v2378 = vmax.f32 %v2224, 0.0
    %v2379 = vmax.f32 %v2226, 0.0
    %v2380 = vmax.f32 %v1844, 0.0
    %v2381 = vmax.f32 %v1846, 0.0
    %v2382 = vmax.f32 %v2230, 0.0
    %v2383 = vmax.f32 %v2232, 0.0
    %v2384 = vmax.f32 %v1848, 0.0
    %v2385 = vmax.f32 %v1850, 0.0
    %v2386 = vmax.f32 %v2234, 0.0
    %v2387 = vmax.f32 %v2236, 0.0
    %v2388 = vmax.f32 %v1854, 0.0
    %v2389 = vmax.f32 %v1856, 0.0
    %v2390 = vmax.f32 %v2240, 0.0
    %v2391 = vmax.f32 %v2242, 0.0
    %v2392 = vmax.f32 %v1858, 0.0
    %v2393 = vmax.f32 %v1860, 0.0
    %v2394 = vmax.f32 %v2244, 0.0
    %v2395 = vmax.f32 %v2246, 0.0
    %v2396 = vmax.f32 %v1864, 0.0
    %v2397 = vmax.f32 %v1866, 0.0
    %v2398 = vmax.f32 %v2250, 0.0
    %v2399 = vmax.f32 %v2252, 0.0
    %v2400 = vmax.f32 %v1868, 0.0
    %v2401 = vmax.f32 %v1870, 0.0
    %v2402 = vmax.f32 %v2254, 0.0
    %v2403 = vmax.f32 %v2256, 0.0
    %v2404 = vmax.f32 %v1874, 0.0
    %v2405 = vmax.f32 %v1876, 0.0
    %v2406 = vmax.f32 %v2260, 0.0
    %v2407 = vmax.f32 %v2262, 0.0
    %v2408 = vmax.f32 %v1878, 0.0
    %v2409 = vmax.f32 %v1880, 0.0
    %v2410 = vmax.f32 %v2264, 0.0
    %v2411 = vmax.f32 %v2266, 0.0
    %v2412 = vmax.f32 %v1884, 0.0
    %v2413 = vmax.f32 %v1886, 0.0
    %v2414 = vmax.f32 %v2270, 0.0
    %v2415 = vmax.f32 %v2272, 0.0
    %v2416 = vmax.f32 %v1888, 0.0
    %v2417 = vmax.f32 %v1890, 0.0
    %v2418 = vmax.f32 %v2274, 0.0
    %v2419 = vmax.f32 %v2276, 0.0
    %v2420 = vmax.f32 %v1894, 0.0
    %v2421 = vmax.f32 %v1896, 0.0
    %v2422 = vmax.f32 %v2280, 0.0
    %v2423 = vmax.f32 %v2282, 0.0
    %v2424 = vmax.f32 %v1898, 0.0
    %v2425 = vmax.f32 %v1900, 0.0
    %v2426 = vmax.f32 %v2284, 0.0
    %v2427 = vmax.f32 %v2286, 0.0
    %v2428 = vmax.f32 %v1904, 0.0
    %v2429 = vmax.f32 %v1906, 0.0
    %v2430 = vmax.f32 %v2290, 0.0
    %v2431 = vmax.f32 %v2292, 0.0
    %v2432 = vmax.f32 %v1908, 0.0
    %v2433 = vmax.f32 %v1910, 0.0
    %v2434 = vmax.f32 %v2294, 0.0
    %v2435 = vmax.f32 %v2296, 0.0
    %v2436 = vmax.f32 %v1914, 0.0
    %v2437 = vmax.f32 %v1916, 0.0
    %v2438 = vmax.f32 %v2300, 0.0
    %v2439 = vmax.f32 %v2302, 0.0
    %v2440 = vmax.f32 %v1918, 0.0
    %v2441 = vmax.f32 %v1920, 0.0
    %v2442 = vmax.f32 %v2304, 0.0
    %v2443 = vmax.f32 %v2306, 0.0
    %v2444 = vmax.f32 %v1924, 0.0
    %v2445 = vmax.f32 %v1926, 0.0
    %v2446 = vmax.f32 %v2310, 0.0
    %v2447 = vmax.f32 %v2312, 0.0
    %v2448 = vmax.f32 %v1928, 0.0
    %v2449 = vmax.f32 %v1930, 0.0
    %v2450 = vmax.f32 %v2314, 0.0
    %v2451 = vmax.f32 %v2316, 0.0
    %v2452 = vmax.f32 %v1934, 0.0
    %v2453 = vmax.f32 %v1936, 0.0
    %v2454 = vmax.f32 %v2320, 0.0
    %v2455 = vmax.f32 %v2322, 0.0
    %v2456 = vmax.f32 %v1938, 0.0
    %v2457 = vmax.f32 %v1940, 0.0
    %v2458 = vmax.f32 %v2324, 0.0
    %v2459 = vmax.f32 %v2326, 0.0
    %v2460 = vmax.f32 %v1944, 0.0
    %v2461 = vmax.f32 %v1946, 0.0
    %v2462 = vmax.f32 %v2330, 0.0
    %v2463 = vmax.f32 %v2332, 0.0
    %v2464 = vmax.f32 %v1948, 0.0
    %v2465 = vmax.f32 %v1950, 0.0
    %v2466 = vmax.f32 %v2334, 0.0
    %v2467 = vmax.f32 %v2336, 0.0
    %v2468 = vmax.f32 %v1954, 0.0
    %v2469 = vmax.f32 %v1956, 0.0
    %v2470 = vmax.f32 %v2340, 0.0
    %v2471 = vmax.f32 %v2342, 0.0
    %v2472 = vmax.f32 %v1958, 0.0
    %v2473 = vmax.f32 %v1960, 0.0
    %v2474 = vmax.f32 %v2344, 0.0
    %v2475 = vmax.f32 %v2346, 0.0
    %v2476 = vpack.c.bf16 %v2352, %v2348
    %v2477 = vpack.c.bf16 %v2353, %v2349
    %v2478 = vpack.c.bf16 %v2354, %v2350
    %v2479 = vpack.c.bf16 %v2355, %v2351
    %v2480 = vpack.c.bf16 %v2360, %v2356
    %v2481 = vpack.c.bf16 %v2361, %v2357
    %v2482 = vpack.c.bf16 %v2362, %v2358
    %v2483 = vpack.c.bf16 %v2363, %v2359
    %v2484 = vpack.c.bf16 %v2368, %v2364
    %v2485 = vpack.c.bf16 %v2369, %v2365
    %v2486 = vpack.c.bf16 %v2370, %v2366
    %v2487 = vpack.c.bf16 %v2371, %v2367
    %v2488 = vpack.c.bf16 %v2376, %v2372
    %v2489 = vpack.c.bf16 %v2377, %v2373
    %v2490 = vpack.c.bf16 %v2378, %v2374
    %v2491 = vpack.c.bf16 %v2379, %v2375
    %v2492 = vpack.c.bf16 %v2384, %v2380
    %v2493 = vpack.c.bf16 %v2385, %v2381
    %v2494 = vpack.c.bf16 %v2386, %v2382
    %v2495 = vpack.c.bf16 %v2387, %v2383
    %v2496 = vpack.c.bf16 %v2392, %v2388
    %v2497 = vpack.c.bf16 %v2393, %v2389
    %v2498 = vpack.c.bf16 %v2394, %v2390
    %v2499 = vpack.c.bf16 %v2395, %v2391
    %v2500 = vpack.c.bf16 %v2400, %v2396
    %v2501 = vpack.c.bf16 %v2401, %v2397
    %v2502 = vpack.c.bf16 %v2402, %v2398
    %v2503 = vpack.c.bf16 %v2403, %v2399
    %v2504 = vpack.c.bf16 %v2408, %v2404
    %v2505 = vpack.c.bf16 %v2409, %v2405
    %v2506 = vpack.c.bf16 %v2410, %v2406
    %v2507 = vpack.c.bf16 %v2411, %v2407
    %v2508 = vpack.c.bf16 %v2416, %v2412
    %v2509 = vpack.c.bf16 %v2417, %v2413
    %v2510 = vpack.c.bf16 %v2418, %v2414
    %v2511 = vpack.c.bf16 %v2419, %v2415
    %v2512 = vpack.c.bf16 %v2424, %v2420
    %v2513 = vpack.c.bf16 %v2425, %v2421
    %v2514 = vpack.c.bf16 %v2426, %v2422
    %v2515 = vpack.c.bf16 %v2427, %v2423
    %v2516 = vpack.c.bf16 %v2432, %v2428
    %v2517 = vpack.c.bf16 %v2433, %v2429
    %v2518 = vpack.c.bf16 %v2434, %v2430
    %v2519 = vpack.c.bf16 %v2435, %v2431
    %v2520 = vpack.c.bf16 %v2440, %v2436
    %v2521 = vpack.c.bf16 %v2441, %v2437
    %v2522 = vpack.c.bf16 %v2442, %v2438
    %v2523 = vpack.c.bf16 %v2443, %v2439
    %v2524 = vpack.c.bf16 %v2448, %v2444
    %v2525 = vpack.c.bf16 %v2449, %v2445
    %v2526 = vpack.c.bf16 %v2450, %v2446
    %v2527 = vpack.c.bf16 %v2451, %v2447
    %v2528 = vpack.c.bf16 %v2456, %v2452
    %v2529 = vpack.c.bf16 %v2457, %v2453
    %v2530 = vpack.c.bf16 %v2458, %v2454
    %v2531 = vpack.c.bf16 %v2459, %v2455
    %v2532 = vpack.c.bf16 %v2464, %v2460
    %v2533 = vpack.c.bf16 %v2465, %v2461
    %v2534 = vpack.c.bf16 %v2466, %v2462
    %v2535 = vpack.c.bf16 %v2467, %v2463
    %v2536 = vpack.c.bf16 %v2472, %v2468
    %v2537 = vpack.c.bf16 %v2473, %v2469
    %v2538 = vpack.c.bf16 %v2474, %v2470
    %v2539 = vpack.c.bf16 %v2475, %v2471
    %v2540 = vld [vmem:[%s5] sm:$0xf]
    %v2541 = vld [vmem:[%s5 + $0x4] sm:$0xf]
    %v2542 = vld [vmem:[%s5 + $0x8] sm:$0xf]
    %v2543 = vld [vmem:[%s5 + $0xc] sm:$0xf]
    %v2544 = vld [vmem:[%s5 + $0x10] sm:$0xf]
    %v2545 = vld [vmem:[%s5 + $0x14] sm:$0xf]
    %v2546 = vld [vmem:[%s5 + $0x18] sm:$0xf]
    %v2547 = vld [vmem:[%s5 + $0x1c] sm:$0xf]
    %v2548 = vld [vmem:[%s5 + $0x20] sm:$0xf]
    %v2549 = vld [vmem:[%s5 + $0x24] sm:$0xf]
    %v2550 = vld [vmem:[%s5 + $0x28] sm:$0xf]
    %v2551 = vld [vmem:[%s5 + $0x2c] sm:$0xf]
    %v2552 = vld [vmem:[%s5 + $0x30] sm:$0xf]
    %v2553 = vld [vmem:[%s5 + $0x34] sm:$0xf]
    %v2554 = vld [vmem:[%s5 + $0x38] sm:$0xf]
    %v2555 = vld [vmem:[%s5 + $0x3c] sm:$0xf]
    %v2556 = vld [vmem:[%s5 + $0x40] sm:$0xf]
    %v2557 = vld [vmem:[%s5 + $0x44] sm:$0xf]
    %v2558 = vld [vmem:[%s5 + $0x48] sm:$0xf]
    %v2559 = vld [vmem:[%s5 + $0x4c] sm:$0xf]
    %v2560 = vld [vmem:[%s5 + $0x50] sm:$0xf]
    %v2561 = vld [vmem:[%s5 + $0x54] sm:$0xf]
    %v2562 = vld [vmem:[%s5 + $0x58] sm:$0xf]
    %v2563 = vld [vmem:[%s5 + $0x5c] sm:$0xf]
    %v2564 = vld [vmem:[%s5 + $0x60] sm:$0xf]
    %v2565 = vld [vmem:[%s5 + $0x64] sm:$0xf]
    %v2566 = vld [vmem:[%s5 + $0x68] sm:$0xf]
    %v2567 = vld [vmem:[%s5 + $0x6c] sm:$0xf]
    %v2568 = vld [vmem:[%s5 + $0x70] sm:$0xf]
    %v2569 = vld [vmem:[%s5 + $0x74] sm:$0xf]
    %v2570 = vld [vmem:[%s5 + $0x78] sm:$0xf]
    %v2571 = vld [vmem:[%s5 + $0x7c] sm:$0xf]
    %v2572 = vld [vmem:[%s5 + $0x80] sm:$0xf]
    %v2573 = vld [vmem:[%s5 + $0x84] sm:$0xf]
    %v2574 = vld [vmem:[%s5 + $0x88] sm:$0xf]
    %v2575 = vld [vmem:[%s5 + $0x8c] sm:$0xf]
    %v2576 = vld [vmem:[%s5 + $0x90] sm:$0xf]
    %v2577 = vld [vmem:[%s5 + $0x94] sm:$0xf]
    %v2578 = vld [vmem:[%s5 + $0x98] sm:$0xf]
    %v2579 = vld [vmem:[%s5 + $0x9c] sm:$0xf]
    %v2580 = vld [vmem:[%s5 + $0xa0] sm:$0xf]
    %v2581 = vld [vmem:[%s5 + $0xa4] sm:$0xf]
    %v2582 = vld [vmem:[%s5 + $0xa8] sm:$0xf]
    %v2583 = vld [vmem:[%s5 + $0xac] sm:$0xf]
    %v2584 = vld [vmem:[%s5 + $0xb0] sm:$0xf]
    %v2585 = vld [vmem:[%s5 + $0xb4] sm:$0xf]
    %v2586 = vld [vmem:[%s5 + $0xb8] sm:$0xf]
    %v2587 = vld [vmem:[%s5 + $0xbc] sm:$0xf]
    %v2588 = vld [vmem:[%s5 + $0xc0] sm:$0xf]
    %v2589 = vld [vmem:[%s5 + $0xc4] sm:$0xf]
    %v2590 = vld [vmem:[%s5 + $0xc8] sm:$0xf]
    %v2591 = vld [vmem:[%s5 + $0xcc] sm:$0xf]
    %v2592 = vld [vmem:[%s5 + $0xd0] sm:$0xf]
    %v2593 = vld [vmem:[%s5 + $0xd4] sm:$0xf]
    %v2594 = vld [vmem:[%s5 + $0xd8] sm:$0xf]
    %v2595 = vld [vmem:[%s5 + $0xdc] sm:$0xf]
    %v2596 = vld [vmem:[%s5 + $0xe0] sm:$0xf]
    %v2597 = vld [vmem:[%s5 + $0xe4] sm:$0xf]
    %v2598 = vld [vmem:[%s5 + $0xe8] sm:$0xf]
    %v2599 = vld [vmem:[%s5 + $0xec] sm:$0xf]
    %v2600 = vld [vmem:[%s5 + $0xf0] sm:$0xf]
    %v2601 = vld [vmem:[%s5 + $0xf4] sm:$0xf]
    %v2602 = vld [vmem:[%s5 + $0xf8] sm:$0xf]
    %v2603 = vld [vmem:[%s5 + $0xfc] sm:$0xf]
    %v2604 = vld [vmem:[%s6] sm:$0x1]
    %v2606 = vlaneseq
    %v2607 = vshrl.u32 %v2606, 7
    %v2608 = vsub.s32 0, %v2607
    %v2609 = vrot.slane %v2604, %v2608
    %v2675 = vunpack.c.l.b16 %v2540
    %v2676 = vunpack.c.l.b16 %v2541
    %v2677 = vunpack.c.l.b16 %v2542
    %v2678 = vunpack.c.l.b16 %v2543
    %v2679 = vunpack.c.l.b16 %v2544
    %v2680 = vunpack.c.l.b16 %v2545
    %v2681 = vunpack.c.l.b16 %v2546
    %v2682 = vunpack.c.l.b16 %v2547
    %v2683 = vunpack.c.l.b16 %v2548
    %v2684 = vunpack.c.l.b16 %v2549
    %v2685 = vunpack.c.l.b16 %v2550
    %v2686 = vunpack.c.l.b16 %v2551
    %v2687 = vunpack.c.l.b16 %v2552
    %v2688 = vunpack.c.l.b16 %v2553
    %v2689 = vunpack.c.l.b16 %v2554
    %v2690 = vunpack.c.l.b16 %v2555
    %v2691 = vunpack.c.l.b16 %v2556
    %v2692 = vunpack.c.l.b16 %v2557
    %v2693 = vunpack.c.l.b16 %v2558
    %v2694 = vunpack.c.l.b16 %v2559
    %v2695 = vunpack.c.l.b16 %v2560
    %v2696 = vunpack.c.l.b16 %v2561
    %v2697 = vunpack.c.l.b16 %v2562
    %v2698 = vunpack.c.l.b16 %v2563
    %v2699 = vunpack.c.l.b16 %v2564
    %v2700 = vunpack.c.l.b16 %v2565
    %v2701 = vunpack.c.l.b16 %v2566
    %v2702 = vunpack.c.l.b16 %v2567
    %v2703 = vunpack.c.l.b16 %v2568
    %v2704 = vunpack.c.l.b16 %v2569
    %v2705 = vunpack.c.l.b16 %v2570
    %v2706 = vunpack.c.l.b16 %v2571
    %v2707 = vunpack.c.l.b16 %v2572
    %v2708 = vunpack.c.l.b16 %v2573
    %v2709 = vunpack.c.l.b16 %v2574
    %v2710 = vunpack.c.l.b16 %v2575
    %v2711 = vunpack.c.l.b16 %v2576
    %v2712 = vunpack.c.l.b16 %v2577
    %v2713 = vunpack.c.l.b16 %v2578
    %v2714 = vunpack.c.l.b16 %v2579
    %v2715 = vunpack.c.l.b16 %v2580
    %v2716 = vunpack.c.l.b16 %v2581
    %v2717 = vunpack.c.l.b16 %v2582
    %v2718 = vunpack.c.l.b16 %v2583
    %v2719 = vunpack.c.l.b16 %v2584
    %v2720 = vunpack.c.l.b16 %v2585
    %v2721 = vunpack.c.l.b16 %v2586
    %v2722 = vunpack.c.l.b16 %v2587
    %v2723 = vunpack.c.l.b16 %v2588
    %v2724 = vunpack.c.l.b16 %v2589
    %v2725 = vunpack.c.l.b16 %v2590
    %v2726 = vunpack.c.l.b16 %v2591
    %v2727 = vunpack.c.l.b16 %v2592
    %v2728 = vunpack.c.l.b16 %v2593
    %v2729 = vunpack.c.l.b16 %v2594
    %v2730 = vunpack.c.l.b16 %v2595
    %v2731 = vunpack.c.l.b16 %v2596
    %v2732 = vunpack.c.l.b16 %v2597
    %v2733 = vunpack.c.l.b16 %v2598
    %v2734 = vunpack.c.l.b16 %v2599
    %v2735 = vunpack.c.l.b16 %v2600
    %v2736 = vunpack.c.l.b16 %v2601
    %v2737 = vunpack.c.l.b16 %v2602
    %v2738 = vunpack.c.l.b16 %v2603
    %v2739 = vpack.c.b16 %v2676, %v2675
    %v2740 = vpack.c.b16 %v2678, %v2677
    %v2741 = vpack.c.b16 %v2680, %v2679
    %v2742 = vpack.c.b16 %v2682, %v2681
    %v2743 = vpack.c.b16 %v2684, %v2683
    %v2744 = vpack.c.b16 %v2686, %v2685
    %v2745 = vpack.c.b16 %v2688, %v2687
    %v2746 = vpack.c.b16 %v2690, %v2689
    %v2747 = vpack.c.b16 %v2692, %v2691
    %v2748 = vpack.c.b16 %v2694, %v2693
    %v2749 = vpack.c.b16 %v2696, %v2695
    %v2750 = vpack.c.b16 %v2698, %v2697
    %v2751 = vpack.c.b16 %v2700, %v2699
    %v2752 = vpack.c.b16 %v2702, %v2701
    %v2753 = vpack.c.b16 %v2704, %v2703
    %v2754 = vpack.c.b16 %v2706, %v2705
    %v2755 = vpack.c.b16 %v2708, %v2707
    %v2756 = vpack.c.b16 %v2710, %v2709
    %v2757 = vpack.c.b16 %v2712, %v2711
    %v2758 = vpack.c.b16 %v2714, %v2713
    %v2759 = vpack.c.b16 %v2716, %v2715
    %v2760 = vpack.c.b16 %v2718, %v2717
    %v2761 = vpack.c.b16 %v2720, %v2719
    %v2762 = vpack.c.b16 %v2722, %v2721
    %v2763 = vpack.c.b16 %v2724, %v2723
    %v2764 = vpack.c.b16 %v2726, %v2725
    %v2765 = vpack.c.b16 %v2728, %v2727
    %v2766 = vpack.c.b16 %v2730, %v2729
    %v2767 = vpack.c.b16 %v2732, %v2731
    %v2768 = vpack.c.b16 %v2734, %v2733
    %v2769 = vpack.c.b16 %v2736, %v2735
    %v2770 = vpack.c.b16 %v2738, %v2737
    %2803 = vmatprep.subr.bf16.mxu0 0
    %2804 = vmatpush1.bf16.msra.mxu0 %v2746
    %2805 = vmatprep.subr.bf16.mxu0 0
    %2806 = vmatpush1.bf16.msra.mxu0 %v2745
    %2807 = vmatprep.subr.bf16.mxu0 0
    %2808 = vmatpush1.bf16.msra.mxu0 %v2744
    %2809 = vmatprep.subr.bf16.mxu0 0
    %2810 = vmatpush1.bf16.msra.mxu0 %v2743
    %2811 = vmatprep.subr.bf16.mxu0 0
    %2812 = vmatpush1.bf16.msra.mxu0 %v2742
    %2813 = vmatprep.subr.bf16.mxu0 0
    %2814 = vmatpush1.bf16.msra.mxu0 %v2741
    %2815 = vmatprep.subr.bf16.mxu0 0
    %2816 = vmatpush1.bf16.msra.mxu0 %v2740
    %2817 = vmatprep.subr.bf16.mxu0 0
    %2818 = vmatpush1.bf16.msra.mxu0 %v2739
    %2819 = vmatprep.subr.bf16.mxu0 0
    %2820 = vmatpush2.bf16.msra.mxu0 %v2754
    %2821 = vmatprep.subr.bf16.mxu0 0
    %2822 = vmatpush2.bf16.msra.mxu0 %v2753
    %2823 = vmatprep.subr.bf16.mxu0 0
    %2824 = vmatpush2.bf16.msra.mxu0 %v2752
    %2825 = vmatprep.subr.bf16.mxu0 0
    %2826 = vmatpush2.bf16.msra.mxu0 %v2751
    %2827 = vmatprep.subr.bf16.mxu0 0
    %2828 = vmatpush2.bf16.msra.mxu0 %v2750
    %2829 = vmatprep.subr.bf16.mxu0 0
    %2830 = vmatpush2.bf16.msra.mxu0 %v2749
    %2831 = vmatprep.subr.bf16.mxu0 0
    %2832 = vmatpush2.bf16.msra.mxu0 %v2748
    %2833 = vmatprep.subr.bf16.mxu0 0
    %2834 = vmatpush2.bf16.msra.mxu0 %v2747
    %2835 = vmatprep.mubr.bf16.mxu0 %v2477
    %2836 = vmatmul.mubr.bf16.gmra.mxu0 %v2476
    %v2837 = vpop.f32.mrf.mxu0
    %v2838 = vadd.f32 %v2609, %v2837
    %v2839 = vpop.f32.mrf.mxu0
    %v2840 = vpop.f32.mrf.mxu0
    %v2841 = vadd.f32 %v2609, %v2840
    %v2842 = vpop.f32.mrf.mxu0
    %2843 = vmatprep.mubr.bf16.mxu0 %v2481
    %2844 = vmatmul.mubr.bf16.gmra.mxu0 %v2480
    %v2845 = vpop.f32.mrf.mxu0
    %v2846 = vadd.f32 %v2609, %v2845
    %v2847 = vpop.f32.mrf.mxu0
    %v2848 = vpop.f32.mrf.mxu0
    %v2849 = vadd.f32 %v2609, %v2848
    %v2850 = vpop.f32.mrf.mxu0
    %2851 = vmatprep.mubr.bf16.mxu0 %v2485
    %2852 = vmatmul.mubr.bf16.gmra.mxu0 %v2484
    %v2853 = vpop.f32.mrf.mxu0
    %v2854 = vadd.f32 %v2609, %v2853
    %v2855 = vpop.f32.mrf.mxu0
    %v2856 = vpop.f32.mrf.mxu0
    %v2857 = vadd.f32 %v2609, %v2856
    %v2858 = vpop.f32.mrf.mxu0
    %2859 = vmatprep.mubr.bf16.mxu0 %v2489
    %2860 = vmatmul.mubr.bf16.gmra.mxu0 %v2488
    %v2861 = vpop.f32.mrf.mxu0
    %v2862 = vadd.f32 %v2609, %v2861
    %v2863 = vpop.f32.mrf.mxu0
    %v2864 = vpop.f32.mrf.mxu0
    %v2865 = vadd.f32 %v2609, %v2864
    %v2866 = vpop.f32.mrf.mxu0
    %2867 = vmatprep.mubr.bf16.mxu0 %v2493
    %2868 = vmatmul.mubr.bf16.gmra.mxu0 %v2492
    %v2869 = vpop.f32.mrf.mxu0
    %v2870 = vadd.f32 %v2609, %v2869
    %v2871 = vpop.f32.mrf.mxu0
    %v2872 = vpop.f32.mrf.mxu0
    %v2873 = vadd.f32 %v2609, %v2872
    %v2874 = vpop.f32.mrf.mxu0
    %2875 = vmatprep.mubr.bf16.mxu0 %v2497
    %2876 = vmatmul.mubr.bf16.gmra.mxu0 %v2496
    %v2877 = vpop.f32.mrf.mxu0
    %v2878 = vadd.f32 %v2609, %v2877
    %v2879 = vpop.f32.mrf.mxu0
    %v2880 = vpop.f32.mrf.mxu0
    %v2881 = vadd.f32 %v2609, %v2880
    %v2882 = vpop.f32.mrf.mxu0
    %2883 = vmatprep.mubr.bf16.mxu0 %v2501
    %2884 = vmatmul.mubr.bf16.gmra.mxu0 %v2500
    %v2885 = vpop.f32.mrf.mxu0
    %v2886 = vadd.f32 %v2609, %v2885
    %v2887 = vpop.f32.mrf.mxu0
    %v2888 = vpop.f32.mrf.mxu0
    %v2889 = vadd.f32 %v2609, %v2888
    %v2890 = vpop.f32.mrf.mxu0
    %2891 = vmatprep.mubr.bf16.mxu0 %v2505
    %2892 = vmatmul.mubr.bf16.gmra.mxu0 %v2504
    %v2893 = vpop.f32.mrf.mxu0
    %v2894 = vadd.f32 %v2609, %v2893
    %v2895 = vpop.f32.mrf.mxu0
    %v2896 = vpop.f32.mrf.mxu0
    %v2897 = vadd.f32 %v2609, %v2896
    %v2898 = vpop.f32.mrf.mxu0
    %2899 = vmatprep.mubr.bf16.mxu0 %v2509
    %2900 = vmatmul.mubr.bf16.gmra.mxu0 %v2508
    %v2901 = vpop.f32.mrf.mxu0
    %v2902 = vadd.f32 %v2609, %v2901
    %v2903 = vpop.f32.mrf.mxu0
    %v2904 = vpop.f32.mrf.mxu0
    %v2905 = vadd.f32 %v2609, %v2904
    %v2906 = vpop.f32.mrf.mxu0
    %2907 = vmatprep.mubr.bf16.mxu0 %v2513
    %2908 = vmatmul.mubr.bf16.gmra.mxu0 %v2512
    %v2909 = vpop.f32.mrf.mxu0
    %v2910 = vadd.f32 %v2609, %v2909
    %v2911 = vpop.f32.mrf.mxu0
    %v2912 = vpop.f32.mrf.mxu0
    %v2913 = vadd.f32 %v2609, %v2912
    %v2914 = vpop.f32.mrf.mxu0
    %2915 = vmatprep.mubr.bf16.mxu0 %v2517
    %2916 = vmatmul.mubr.bf16.gmra.mxu0 %v2516
    %v2917 = vpop.f32.mrf.mxu0
    %v2918 = vadd.f32 %v2609, %v2917
    %v2919 = vpop.f32.mrf.mxu0
    %v2920 = vpop.f32.mrf.mxu0
    %v2921 = vadd.f32 %v2609, %v2920
    %v2922 = vpop.f32.mrf.mxu0
    %2923 = vmatprep.mubr.bf16.mxu0 %v2521
    %2924 = vmatmul.mubr.bf16.gmra.mxu0 %v2520
    %v2925 = vpop.f32.mrf.mxu0
    %v2926 = vadd.f32 %v2609, %v2925
    %v2927 = vpop.f32.mrf.mxu0
    %v2928 = vpop.f32.mrf.mxu0
    %v2929 = vadd.f32 %v2609, %v2928
    %v2930 = vpop.f32.mrf.mxu0
    %2931 = vmatprep.mubr.bf16.mxu0 %v2525
    %2932 = vmatmul.mubr.bf16.gmra.mxu0 %v2524
    %v2933 = vpop.f32.mrf.mxu0
    %v2934 = vadd.f32 %v2609, %v2933
    %v2935 = vpop.f32.mrf.mxu0
    %v2936 = vpop.f32.mrf.mxu0
    %v2937 = vadd.f32 %v2609, %v2936
    %v2938 = vpop.f32.mrf.mxu0
    %2939 = vmatprep.mubr.bf16.mxu0 %v2529
    %2940 = vmatmul.mubr.bf16.gmra.mxu0 %v2528
    %v2941 = vpop.f32.mrf.mxu0
    %v2942 = vadd.f32 %v2609, %v2941
    %v2943 = vpop.f32.mrf.mxu0
    %v2944 = vpop.f32.mrf.mxu0
    %v2945 = vadd.f32 %v2609, %v2944
    %v2946 = vpop.f32.mrf.mxu0
    %2947 = vmatprep.mubr.bf16.mxu0 %v2533
    %2948 = vmatmul.mubr.bf16.gmra.mxu0 %v2532
    %v2949 = vpop.f32.mrf.mxu0
    %v2950 = vadd.f32 %v2609, %v2949
    %v2951 = vpop.f32.mrf.mxu0
    %v2952 = vpop.f32.mrf.mxu0
    %v2953 = vadd.f32 %v2609, %v2952
    %v2954 = vpop.f32.mrf.mxu0
    %2955 = vmatprep.mubr.bf16.mxu0 %v2537
    %2956 = vmatmul.mubr.bf16.gmra.mxu0 %v2536
    %v2957 = vpop.f32.mrf.mxu0
    %v2958 = vadd.f32 %v2609, %v2957
    %v2959 = vpop.f32.mrf.mxu0
    %v2960 = vpop.f32.mrf.mxu0
    %v2961 = vadd.f32 %v2609, %v2960
    %v2962 = vpop.f32.mrf.mxu0
    %2963 = vdwg.mxu0
    %2964 = vmatprep.subr.bf16.mxu0 0
    %2965 = vmatpush1.bf16.msra.mxu0 %v2762
    %2966 = vmatprep.subr.bf16.mxu0 0
    %2967 = vmatpush1.bf16.msra.mxu0 %v2761
    %2968 = vmatprep.subr.bf16.mxu0 0
    %2969 = vmatpush1.bf16.msra.mxu0 %v2760
    %2970 = vmatprep.subr.bf16.mxu0 0
    %2971 = vmatpush1.bf16.msra.mxu0 %v2759
    %2972 = vmatprep.subr.bf16.mxu0 0
    %2973 = vmatpush1.bf16.msra.mxu0 %v2758
    %2974 = vmatprep.subr.bf16.mxu0 0
    %2975 = vmatpush1.bf16.msra.mxu0 %v2757
    %2976 = vmatprep.subr.bf16.mxu0 0
    %2977 = vmatpush1.bf16.msra.mxu0 %v2756
    %2978 = vmatprep.subr.bf16.mxu0 0
    %2979 = vmatpush1.bf16.msra.mxu0 %v2755
    %2980 = vmatprep.subr.bf16.mxu0 0
    %2981 = vmatpush2.bf16.msra.mxu0 %v2770
    %2982 = vmatprep.subr.bf16.mxu0 0
    %2983 = vmatpush2.bf16.msra.mxu0 %v2769
    %2984 = vmatprep.subr.bf16.mxu0 0
    %2985 = vmatpush2.bf16.msra.mxu0 %v2768
    %2986 = vmatprep.subr.bf16.mxu0 0
    %2987 = vmatpush2.bf16.msra.mxu0 %v2767
    %2988 = vmatprep.subr.bf16.mxu0 0
    %2989 = vmatpush2.bf16.msra.mxu0 %v2766
    %2990 = vmatprep.subr.bf16.mxu0 0
    %2991 = vmatpush2.bf16.msra.mxu0 %v2765
    %2992 = vmatprep.subr.bf16.mxu0 0
    %2993 = vmatpush2.bf16.msra.mxu0 %v2764
    %2994 = vmatprep.subr.bf16.mxu0 0
    %2995 = vmatpush2.bf16.msra.mxu0 %v2763
    %2996 = vmatprep.mubr.bf16.mxu0 %v2479
    %2997 = vmatmul.mubr.bf16.gmra.mxu0 %v2478
    %v2998 = vpop.f32.mrf.mxu0
    %v2999 = vadd.f32 %v2838, %v2998
    %v3000 = vpop.f32.mrf.mxu0
    %v3001 = vpop.f32.mrf.mxu0
    %v3002 = vadd.f32 %v2841, %v3001
    %v3003 = vpop.f32.mrf.mxu0
    %3004 = vmatprep.mubr.bf16.mxu0 %v2483
    %3005 = vmatmul.mubr.bf16.gmra.mxu0 %v2482
    %v3006 = vpop.f32.mrf.mxu0
    %v3007 = vadd.f32 %v2846, %v3006
    %v3008 = vpop.f32.mrf.mxu0
    %v3009 = vpop.f32.mrf.mxu0
    %v3010 = vadd.f32 %v2849, %v3009
    %v3011 = vpop.f32.mrf.mxu0
    %3012 = vmatprep.mubr.bf16.mxu0 %v2487
    %3013 = vmatmul.mubr.bf16.gmra.mxu0 %v2486
    %v3014 = vpop.f32.mrf.mxu0
    %v3015 = vadd.f32 %v2854, %v3014
    %v3016 = vpop.f32.mrf.mxu0
    %v3017 = vpop.f32.mrf.mxu0
    %v3018 = vadd.f32 %v2857, %v3017
    %v3019 = vpop.f32.mrf.mxu0
    %3020 = vmatprep.mubr.bf16.mxu0 %v2491
    %3021 = vmatmul.mubr.bf16.gmra.mxu0 %v2490
    %v3022 = vpop.f32.mrf.mxu0
    %v3023 = vadd.f32 %v2862, %v3022
    %v3024 = vpop.f32.mrf.mxu0
    %v3025 = vpop.f32.mrf.mxu0
    %v3026 = vadd.f32 %v2865, %v3025
    %v3027 = vpop.f32.mrf.mxu0
    %3028 = vmatprep.mubr.bf16.mxu0 %v2495
    %3029 = vmatmul.mubr.bf16.gmra.mxu0 %v2494
    %v3030 = vpop.f32.mrf.mxu0
    %v3031 = vadd.f32 %v2870, %v3030
    %v3032 = vpop.f32.mrf.mxu0
    %v3033 = vpop.f32.mrf.mxu0
    %v3034 = vadd.f32 %v2873, %v3033
    %v3035 = vpop.f32.mrf.mxu0
    %3036 = vmatprep.mubr.bf16.mxu0 %v2499
    %3037 = vmatmul.mubr.bf16.gmra.mxu0 %v2498
    %v3038 = vpop.f32.mrf.mxu0
    %v3039 = vadd.f32 %v2878, %v3038
    %v3040 = vpop.f32.mrf.mxu0
    %v3041 = vpop.f32.mrf.mxu0
    %v3042 = vadd.f32 %v2881, %v3041
    %v3043 = vpop.f32.mrf.mxu0
    %3044 = vmatprep.mubr.bf16.mxu0 %v2503
    %3045 = vmatmul.mubr.bf16.gmra.mxu0 %v2502
    %v3046 = vpop.f32.mrf.mxu0
    %v3047 = vadd.f32 %v2886, %v3046
    %v3048 = vpop.f32.mrf.mxu0
    %v3049 = vpop.f32.mrf.mxu0
    %v3050 = vadd.f32 %v2889, %v3049
    %v3051 = vpop.f32.mrf.mxu0
    %3052 = vmatprep.mubr.bf16.mxu0 %v2507
    %3053 = vmatmul.mubr.bf16.gmra.mxu0 %v2506
    %v3054 = vpop.f32.mrf.mxu0
    %v3055 = vadd.f32 %v2894, %v3054
    %v3056 = vpop.f32.mrf.mxu0
    %v3057 = vpop.f32.mrf.mxu0
    %v3058 = vadd.f32 %v2897, %v3057
    %v3059 = vpop.f32.mrf.mxu0
    %3060 = vmatprep.mubr.bf16.mxu0 %v2511
    %3061 = vmatmul.mubr.bf16.gmra.mxu0 %v2510
    %v3062 = vpop.f32.mrf.mxu0
    %v3063 = vadd.f32 %v2902, %v3062
    %v3064 = vpop.f32.mrf.mxu0
    %v3065 = vpop.f32.mrf.mxu0
    %v3066 = vadd.f32 %v2905, %v3065
    %v3067 = vpop.f32.mrf.mxu0
    %3068 = vmatprep.mubr.bf16.mxu0 %v2515
    %3069 = vmatmul.mubr.bf16.gmra.mxu0 %v2514
    %v3070 = vpop.f32.mrf.mxu0
    %v3071 = vadd.f32 %v2910, %v3070
    %v3072 = vpop.f32.mrf.mxu0
    %v3073 = vpop.f32.mrf.mxu0
    %v3074 = vadd.f32 %v2913, %v3073
    %v3075 = vpop.f32.mrf.mxu0
    %3076 = vmatprep.mubr.bf16.mxu0 %v2519
    %3077 = vmatmul.mubr.bf16.gmra.mxu0 %v2518
    %v3078 = vpop.f32.mrf.mxu0
    %v3079 = vadd.f32 %v2918, %v3078
    %v3080 = vpop.f32.mrf.mxu0
    %v3081 = vpop.f32.mrf.mxu0
    %v3082 = vadd.f32 %v2921, %v3081
    %v3083 = vpop.f32.mrf.mxu0
    %3084 = vmatprep.mubr.bf16.mxu0 %v2523
    %3085 = vmatmul.mubr.bf16.gmra.mxu0 %v2522
    %v3086 = vpop.f32.mrf.mxu0
    %v3087 = vadd.f32 %v2926, %v3086
    %v3088 = vpop.f32.mrf.mxu0
    %v3089 = vpop.f32.mrf.mxu0
    %v3090 = vadd.f32 %v2929, %v3089
    %v3091 = vpop.f32.mrf.mxu0
    %3092 = vmatprep.mubr.bf16.mxu0 %v2527
    %3093 = vmatmul.mubr.bf16.gmra.mxu0 %v2526
    %v3094 = vpop.f32.mrf.mxu0
    %v3095 = vadd.f32 %v2934, %v3094
    %v3096 = vpop.f32.mrf.mxu0
    %v3097 = vpop.f32.mrf.mxu0
    %v3098 = vadd.f32 %v2937, %v3097
    %v3099 = vpop.f32.mrf.mxu0
    %3100 = vmatprep.mubr.bf16.mxu0 %v2531
    %3101 = vmatmul.mubr.bf16.gmra.mxu0 %v2530
    %v3102 = vpop.f32.mrf.mxu0
    %v3103 = vadd.f32 %v2942, %v3102
    %v3104 = vpop.f32.mrf.mxu0
    %v3105 = vpop.f32.mrf.mxu0
    %v3106 = vadd.f32 %v2945, %v3105
    %v3107 = vpop.f32.mrf.mxu0
    %3108 = vmatprep.mubr.bf16.mxu0 %v2535
    %3109 = vmatmul.mubr.bf16.gmra.mxu0 %v2534
    %v3110 = vpop.f32.mrf.mxu0
    %v3111 = vadd.f32 %v2950, %v3110
    %v3112 = vpop.f32.mrf.mxu0
    %v3113 = vpop.f32.mrf.mxu0
    %v3114 = vadd.f32 %v2953, %v3113
    %v3115 = vpop.f32.mrf.mxu0
    %3116 = vmatprep.mubr.bf16.mxu0 %v2539
    %3117 = vmatmul.mubr.bf16.gmra.mxu0 %v2538
    %v3118 = vpop.f32.mrf.mxu0
    %v3119 = vadd.f32 %v2958, %v3118
    %v3120 = vpop.f32.mrf.mxu0
    %v3121 = vpop.f32.mrf.mxu0
    %v3122 = vadd.f32 %v2961, %v3121
    %v3123 = vpop.f32.mrf.mxu0
    %3124 = vdwg.mxu0
    %3125 = vst [vmem:[%s7] sm:$0xff] %v2999
    %3126 = vst [vmem:[%s7 + $0x8] sm:$0xff] %v3002
    %3127 = vst [vmem:[%s7 + $0x10] sm:$0xff] %v3007
    %3128 = vst [vmem:[%s7 + $0x18] sm:$0xff] %v3010
    %3129 = vst [vmem:[%s7 + $0x20] sm:$0xff] %v3015
    %3130 = vst [vmem:[%s7 + $0x28] sm:$0xff] %v3018
    %3131 = vst [vmem:[%s7 + $0x30] sm:$0xff] %v3023
    %3132 = vst [vmem:[%s7 + $0x38] sm:$0xff] %v3026
    %3133 = vst [vmem:[%s7 + $0x40] sm:$0xff] %v3031
    %3134 = vst [vmem:[%s7 + $0x48] sm:$0xff] %v3034
    %3135 = vst [vmem:[%s7 + $0x50] sm:$0xff] %v3039
    %3136 = vst [vmem:[%s7 + $0x58] sm:$0xff] %v3042
    %3137 = vst [vmem:[%s7 + $0x60] sm:$0xff] %v3047
    %3138 = vst [vmem:[%s7 + $0x68] sm:$0xff] %v3050
    %3139 = vst [vmem:[%s7 + $0x70] sm:$0xff] %v3055
    %3140 = vst [vmem:[%s7 + $0x78] sm:$0xff] %v3058
    %3141 = vst [vmem:[%s7 + $0x80] sm:$0xff] %v3063
    %3142 = vst [vmem:[%s7 + $0x88] sm:$0xff] %v3066
    %3143 = vst [vmem:[%s7 + $0x90] sm:$0xff] %v3071
    %3144 = vst [vmem:[%s7 + $0x98] sm:$0xff] %v3074
    %3145 = vst [vmem:[%s7 + $0xa0] sm:$0xff] %v3079
    %3146 = vst [vmem:[%s7 + $0xa8] sm:$0xff] %v3082
    %3147 = vst [vmem:[%s7 + $0xb0] sm:$0xff] %v3087
    %3148 = vst [vmem:[%s7 + $0xb8] sm:$0xff] %v3090
    %3149 = vst [vmem:[%s7 + $0xc0] sm:$0xff] %v3095
    %3150 = vst [vmem:[%s7 + $0xc8] sm:$0xff] %v3098
    %3151 = vst [vmem:[%s7 + $0xd0] sm:$0xff] %v3103
    %3152 = vst [vmem:[%s7 + $0xd8] sm:$0xff] %v3106
    %3153 = vst [vmem:[%s7 + $0xe0] sm:$0xff] %v3111
    %3154 = vst [vmem:[%s7 + $0xe8] sm:$0xff] %v3114
    %3155 = vst [vmem:[%s7 + $0xf0] sm:$0xff] %v3119
    %3156 = vst [vmem:[%s7 + $0xf8] sm:$0xff] %v3122
    // Predicated region
    $region34: #{_dqn_forward_jit.1} parent=1 // pred_check
      _
    $region35: #{_dqn_forward_jit.1} parent=1 // pred_check_branch
      %3158 = sbr.rel (0) target = $region37
    $region36: #{_dqn_forward_jit.1} parent=1 // pred_region
      _
    $region37: #{_dqn_forward_jit.1} parent=1 // pred_fallthru
      _
    // Predicated region
    $region38: #{_dqn_forward_jit.1} parent=1 // pred_check
      _
    $region39: #{_dqn_forward_jit.1} parent=1 // pred_check_branch
      %3160 = sbr.rel (0) target = $region41
    $region40: #{_dqn_forward_jit.1} parent=1 // pred_region
      _
    $region41: #{_dqn_forward_jit.1} parent=1 // pred_fallthru
      _
    %3161 = vsyncpa [#allocation3], 1

</llo_original>
